<compile_context>
chip_gen: v7x
topology: tpu7x:2x2x1
jax: 0.10.0
libtpu: 0.0.40
codegen_flags: <defaults>
</compile_context>

<pallas_src>
import functools

import jax
import jax.numpy as jnp
from jax import lax
from jax.experimental import pallas as pl
from jax.experimental.pallas import tpu as pltpu


# -----------------------------------------------------------------------------
# Fused conv kernel: padded NHWC bf16 block -> bf16 im2col -> one MXU matmul
# (f32 accum) -> bias -> activation -> optional fused epilogue -> store.
# -----------------------------------------------------------------------------
def _conv_kernel(x_ref, w_ref, b_ref, o_ref, *, ksize, act, epilogue, out_hw):
    # x_ref: (N, H + ksize - 1, W + ksize - 1, Cin) bf16 (padded iff ksize == 3)
    # w_ref: (ksize*ksize*Cin, tc) bf16
    # b_ref: (1, tc) f32
    # o_ref: (N, H, W, tc) bf16                      epilogue in {none, knn_enhance}
    #        (N, tc)       f32                       epilogue == spatial_mean
    H, W = out_hw
    N = x_ref.shape[0]
    tc = o_ref.shape[-1]

    x = x_ref[...]                                        # bf16, whole batch
    if ksize == 3:
        # Fused im2col in bf16.  Hoist the W-axis (sublane) shifts: only the
        # 3 kw-slices are sublane-unaligned copies; the kh-slices are cheap.
        xw = [x[:, :, kw:kw + W, :] for kw in range(3)]
        taps = [xw[kw][:, kh:kh + H, :, :]
                for kh in range(3) for kw in range(3)]
        patch = jnp.concatenate(taps, axis=-1)            # (N, H, W, 9*Cin) bf16
    else:
        patch = x                                         # 1x1 conv
    patch = patch.reshape(N * H * W, patch.shape[-1])

    acc = jnp.dot(patch, w_ref[...], preferred_element_type=jnp.float32)
    acc = acc + b_ref[...]                                # fused bias (f32)

    if act == "relu":                                     # fused nonlinearity
        acc = jnp.maximum(acc, 0.0)
    elif act == "elu":
        acc = jnp.where(acc > 0.0, acc, jnp.exp(jnp.minimum(acc, 0.0)) - 1.0)

    if epilogue == "spatial_mean":
        # Fused adaptive_avg_pool2d(1): store only the tiny (N, tc) result.
        o_ref[...] = jnp.mean(acc.reshape(N, H * W, tc), axis=1).astype(o_ref.dtype)
    else:
        acc = acc.reshape(N, H * W, tc)
        if epilogue == "knn_enhance":
            # Empty-bank KNN path: cat + 0.1 * adaptive_avg_pool2d(cat),
            # per-channel, fused onto the f32 accumulator before the store.
            pooled = jnp.mean(acc, axis=1, keepdims=True)  # (N, 1, tc)
            acc = acc + 0.1 * pooled
        o_ref[...] = acc.reshape(N, H, W, tc).astype(o_ref.dtype)


def conv2d_pallas(x_nhwc, w2_bf16, bias, *, ksize, pad_mode="zeros", act="none",
                  epilogue="none"):
    """Fused pad + KxK conv + bias + activation (+ optional epilogue).

    x_nhwc : (N, H, W, Cin) float32 or bfloat16 (cast to bf16 internally).
    w2_bf16: (ksize*ksize*Cin, Cout) bfloat16 -- HWIO weights reshaped once.
    bias   : (Cout,) float32.
    Returns (N, H, W, Cout) bf16, or (N, Cout) f32 when epilogue=="spatial_mean".
    """
    N, H, W, Cin = x_nhwc.shape
    KKCin, Cout = w2_bf16.shape
    assert KKCin == ksize * ksize * Cin

    x_p = x_nhwc.astype(jnp.bfloat16)
    if ksize == 3:
        # 1-pixel halo (reflect / zeros) applied once in XLA; the pose decoder
        # runs on the encoder's coarsest level, so this copy is tiny.
        x_p = jnp.pad(x_p, ((0, 0), (1, 1), (1, 1), (0, 0)),
                      mode="reflect" if pad_mode == "reflect" else "constant")
    Hp, Wp = x_p.shape[1], x_p.shape[2]

    # Lane-dense 128-wide output tiles: weight fetched once per tile (batch is
    # folded into the block), >=2 parallel steps for Cout=256 (v7x megacore),
    # matches v5e's 128-wide MXU.
    tc = 128 if (Cout % 128 == 0 and Cout > 128) else Cout
    b2 = bias.reshape(1, Cout).astype(jnp.float32)

    if epilogue == "spatial_mean":
        out_shape = jax.ShapeDtypeStruct((N, Cout), jnp.float32)
        out_spec = pl.BlockSpec((N, tc), lambda j: (0, j))
    else:
        out_shape = jax.ShapeDtypeStruct((N, H, W, Cout), jnp.bfloat16)
        out_spec = pl.BlockSpec((N, H, W, tc), lambda j: (0, 0, 0, j))

    kernel = functools.partial(_conv_kernel, ksize=ksize, act=act,
                               epilogue=epilogue, out_hw=(H, W))
    return pl.pallas_call(
        kernel,
        out_shape=out_shape,
        grid_spec=pltpu.PrefetchScalarGridSpec(
            num_scalar_prefetch=0,
            grid=(Cout // tc,),
            in_specs=[
                # Activations: constant block index across the Cout-tile axis,
                # so they stay resident in VMEM (loaded once).
                pl.BlockSpec((N, Hp, Wp, Cin), lambda j: (0, 0, 0, 0)),
                pl.BlockSpec((KKCin, tc), lambda j: (0, j)),
                pl.BlockSpec((1, tc), lambda j: (0, j)),
            ],
            out_specs=out_spec,
        ),
        compiler_params=pltpu.CompilerParams(
            dimension_semantics=("parallel",),
            vmem_limit_bytes=32 * 1024 * 1024),
    )(x_p, w2_bf16, b2)


# -----------------------------------------------------------------------------
# KNNPoseDecoder_with_intrinsics (default flags): parameters + forward
# -----------------------------------------------------------------------------
def init_decoder_params(key, num_ch_enc_last, num_input_features,
                        num_frames_to_predict_for):
    """Deterministic parameters for the decoder's default configuration."""
    specs = [
        # name      cout                           cin                        k
        ("squeeze", 256,                           num_ch_enc_last,           1),
        ("pose0",   256,                           num_input_features * 256,  3),
        ("pose1",   256,                           256,                       3),
        ("pose2",   6 * num_frames_to_predict_for, 256,                       1),
        # auto_scale head (the PyTorch module hard-codes 256 input channels):
        ("scale0",  128,                           256,                       3),
        ("scale1",  64,                            128,                       3),
    ]
    keys = jax.random.split(key, len(specs) + 1)
    params = {}
    for k_i, (name, cout, cin, ks) in zip(keys[:-1], specs):
        kw_key, kb_key = jax.random.split(k_i)
        std = (cin * ks * ks) ** -0.5
        w_oihw = jax.random.normal(kw_key, (cout, cin, ks, ks), jnp.float32) * std
        b = jax.random.normal(kb_key, (cout,), jnp.float32) * std
        w_hwio = jnp.transpose(w_oihw, (2, 3, 1, 0)).astype(jnp.bfloat16)
        params[name] = {
            "w_hwio": w_hwio,                           # for the XLA reference
            "w2": w_hwio.reshape(ks * ks * cin, cout),  # for the Pallas kernel
            "b": b,
            "ksize": ks,
        }
    kfc_w, kfc_b = jax.random.split(keys[-1])
    params["scale_fc_w"] = jax.random.normal(kfc_w, (64, 1), jnp.float32) * (64 ** -0.5)
    params["scale_fc_b"] = jax.random.normal(kfc_b, (1,), jnp.float32) * 0.1
    return params


def _conv_pallas(params, x, name, pad_mode, act, epilogue="none"):
    layer = params[name]
    return conv2d_pallas(x, layer["w2"], layer["b"], ksize=layer["ksize"],
                         pad_mode=pad_mode, act=act, epilogue=epilogue)


def _conv_reference(params, x, name, pad_mode, act, epilogue="none"):
    """Pure-XLA reference conv with the same bf16-operand / f32-accum math."""
    layer = params[name]
    xb = x.astype(jnp.bfloat16)
    if layer["ksize"] == 3:
        xb = jnp.pad(xb, ((0, 0), (1, 1), (1, 1), (0, 0)),
                     mode="reflect" if pad_mode == "reflect" else "constant")
    out = lax.conv_general_dilated(
        xb, layer["w_hwio"], (1, 1), "VALID",
        dimension_numbers=("NHWC", "HWIO", "NHWC"),
        preferred_element_type=jnp.float32)
    out = out + layer["b"].reshape(1, 1, 1, -1)
    if act == "relu":
        out = jnp.maximum(out, 0.0)
    elif act == "elu":
        out = jnp.where(out > 0.0, out, jnp.exp(jnp.minimum(out, 0.0)) - 1.0)
    if epilogue == "spatial_mean":
        return jnp.mean(out, axis=(1, 2))
    if epilogue == "knn_enhance":
        out = out + 0.1 * jnp.mean(out, axis=(1, 2), keepdims=True)
    return out.astype(jnp.bfloat16)


def knn_pose_decoder_forward(params, last_features_nchw,
                             num_frames_to_predict_for, conv=_conv_pallas):
    """Forward of KNNPoseDecoder_with_intrinsics with its default flags
    (predict_intrinsics=False, auto_scale=True, use_knn=True, empty bank).

    last_features_nchw: list (len == num_input_features) of (N, C_enc, H, W)
        arrays -- the `[f[-1] for f in input_features]` of the PyTorch module.
    Returns (axisangle, translation), each (N, num_frames_to_predict_for, 1, 3).
    """
    # Single NCHW -> NHWC transpose + bf16 cast at the boundary; all internal
    # activations stay bf16 NHWC (lane-dense channels) between the convs.
    feats = [jnp.transpose(f, (0, 2, 3, 1)).astype(jnp.bfloat16)
             for f in last_features_nchw]

    # Squeeze 1x1 conv + ReLU with the KNN empty-bank enhancement fused into
    # the kernel epilogue (cat + 0.1*pooled is per-channel, so it fuses per
    # feature even when num_input_features > 1).
    # TODO(synk): bank_size > 0 KNN branch (top-k cosine search + softmax
    # weighting + fusion MLP) not implemented -- unreachable for a
    # freshly-initialized (empty) feature bank.
    cat = jnp.concatenate(
        [conv(params, f, "squeeze", "zeros", "relu", epilogue="knn_enhance")
         for f in feats], axis=-1)

    out = conv(params, cat, "pose0", "zeros", "relu")
    out = conv(params, out, "pose1", "zeros", "relu")
    # pose2 (1x1, no activation) with the spatial mean fused -> (N, 6*frames) f32
    out = conv(params, out, "pose2", "zeros", "none", epilogue="spatial_mean")

    # auto_scale head: ConvBlock(256->128), ConvBlock(128->64)+GAP, FC, sigmoid.
    s = conv(params, cat, "scale0", "reflect", "elu")
    s = conv(params, s, "scale1", "reflect", "elu", epilogue="spatial_mean")
    s = jax.nn.sigmoid(s @ params["scale_fc_w"] + params["scale_fc_b"])
    scale = jnp.exp(s * (jnp.log(100.0) - jnp.log(0.01)) + jnp.log(0.01))

    out = 0.001 * out.reshape(-1, num_frames_to_predict_for, 1, 6)
    out = out * scale[:, None, None, :]
    axisangle = out[..., :3]
    translation = out[..., 3:]
    # TODO(synk): predict_intrinsics branch and the training-time feature-bank
    # update (stateful buffer writes) are not implemented; both are disabled /
    # side-effect-only in the module's default forward.
    return axisangle, translation


if __name__ == "__main__":
    key = jax.random.PRNGKey(0)
    k_feat, k_params, k_conv = jax.random.split(key, 3)

    # Small shapes consistent with the module: batch 2, one input feature whose
    # last encoder level has 64 channels at 8x8 spatial, 2 frames to predict.
    N, C_ENC, H, W = 2, 64, 8, 8
    NUM_INPUT_FEATURES, NUM_FRAMES = 1, 2

    params = init_decoder_params(k_params, C_ENC, NUM_INPUT_FEATURES, NUM_FRAMES)
    last_features = [jax.random.normal(k_feat, (N, C_ENC, H, W), jnp.float32)]

    # --- direct check of the fused kernel (reflect-padded 3x3 conv + ELU) ---
    xc = jax.random.normal(k_conv, (N, H, W, 256), jnp.float32)
    conv_pl = _conv_pallas(params, xc, "scale0", "reflect", "elu")
    conv_pl = jax.block_until_ready(conv_pl)
    conv_rf = _conv_reference(params, xc, "scale0", "reflect", "elu")
    assert conv_pl.shape == (N, H, W, 128)
    assert jnp.allclose(conv_pl.astype(jnp.float32), conv_rf.astype(jnp.float32),
                        atol=3e-2, rtol=3e-2), "conv mismatch"

    # --- full decoder forward (Pallas convs) vs pure-XLA reference ---
    axisangle, translation = knn_pose_decoder_forward(
        params, last_features, NUM_FRAMES, conv=_conv_pallas)
    axisangle, translation = jax.block_until_ready((axisangle, translation))

    aa_ref, tr_ref = knn_pose_decoder_forward(
        params, last_features, NUM_FRAMES, conv=_conv_reference)

    assert axisangle.shape == (N, NUM_FRAMES, 1, 3)
    assert translation.shape == (N, NUM_FRAMES, 1, 3)
    assert jnp.allclose(axisangle, aa_ref, atol=1e-4, rtol=5e-2), "axisangle mismatch"
    assert jnp.allclose(translation, tr_ref, atol=1e-4, rtol=5e-2), "translation mismatch"

    print("KERNEL_OK")
</pallas_src>

<mosaic_0001>
module attributes {stable_mosaic.version = 11 : i64} {
  func.func @_conv_kernel(%arg0: i32, %arg1: memref<2x10x10x256xbf16, #tpu.memory_space<vmem>>, %arg2: memref<2304x128xbf16, #tpu.memory_space<vmem>>, %arg3: memref<1x128xf32, #tpu.memory_space<vmem>>, %arg4: memref<2x8x8x128xbf16, #tpu.memory_space<vmem>>) attributes {dimension_semantics = [#tpu.dimension_semantics<parallel>], iteration_bounds = array<i64: 1>, scalar_prefetch = 0 : i64, scratch_operands = 0 : i64, tpu.core_type = #tpu.core_type<tc>, window_params = [{pipeline_mode = #tpu.pipeline_mode<synchronous>, transform_indices = @transform_0, window_bounds = array<i64: 2, 10, 10, 256>}, {transform_indices = @transform_1, window_bounds = array<i64: 2304, 128>}, {transform_indices = @transform_2, window_bounds = array<i64: 1, 128>}, {transform_indices = @transform_3, window_bounds = array<i64: 2, 8, 8, 128>}]} {
    %c0 = arith.constant 0 : index
    %c0_0 = arith.constant 0 : index
    %c0_1 = arith.constant 0 : index
    %c0_2 = arith.constant 0 : index
    %0 = vector.load %arg1[%c0, %c0_0, %c0_1, %c0_2] : memref<2x10x10x256xbf16, #tpu.memory_space<vmem>>, vector<2x10x10x256xbf16>
    %1 = vector.extract_strided_slice %0 {offsets = [0, 0, 0, 0], sizes = [2, 10, 8, 256], strides = [1, 1, 1, 1]} : vector<2x10x10x256xbf16> to vector<2x10x8x256xbf16>
    %2 = vector.extract_strided_slice %0 {offsets = [0, 0, 1, 0], sizes = [2, 10, 8, 256], strides = [1, 1, 1, 1]} : vector<2x10x10x256xbf16> to vector<2x10x8x256xbf16>
    %3 = vector.extract_strided_slice %0 {offsets = [0, 0, 2, 0], sizes = [2, 10, 8, 256], strides = [1, 1, 1, 1]} : vector<2x10x10x256xbf16> to vector<2x10x8x256xbf16>
    %4 = vector.extract_strided_slice %1 {offsets = [0, 0, 0, 0], sizes = [2, 8, 8, 256], strides = [1, 1, 1, 1]} : vector<2x10x8x256xbf16> to vector<2x8x8x256xbf16>
    %5 = vector.extract_strided_slice %2 {offsets = [0, 0, 0, 0], sizes = [2, 8, 8, 256], strides = [1, 1, 1, 1]} : vector<2x10x8x256xbf16> to vector<2x8x8x256xbf16>
    %6 = vector.extract_strided_slice %3 {offsets = [0, 0, 0, 0], sizes = [2, 8, 8, 256], strides = [1, 1, 1, 1]} : vector<2x10x8x256xbf16> to vector<2x8x8x256xbf16>
    %7 = vector.extract_strided_slice %1 {offsets = [0, 1, 0, 0], sizes = [2, 8, 8, 256], strides = [1, 1, 1, 1]} : vector<2x10x8x256xbf16> to vector<2x8x8x256xbf16>
    %8 = vector.extract_strided_slice %2 {offsets = [0, 1, 0, 0], sizes = [2, 8, 8, 256], strides = [1, 1, 1, 1]} : vector<2x10x8x256xbf16> to vector<2x8x8x256xbf16>
    %9 = vector.extract_strided_slice %3 {offsets = [0, 1, 0, 0], sizes = [2, 8, 8, 256], strides = [1, 1, 1, 1]} : vector<2x10x8x256xbf16> to vector<2x8x8x256xbf16>
    %10 = vector.extract_strided_slice %1 {offsets = [0, 2, 0, 0], sizes = [2, 8, 8, 256], strides = [1, 1, 1, 1]} : vector<2x10x8x256xbf16> to vector<2x8x8x256xbf16>
    %11 = vector.extract_strided_slice %2 {offsets = [0, 2, 0, 0], sizes = [2, 8, 8, 256], strides = [1, 1, 1, 1]} : vector<2x10x8x256xbf16> to vector<2x8x8x256xbf16>
    %12 = vector.extract_strided_slice %3 {offsets = [0, 2, 0, 0], sizes = [2, 8, 8, 256], strides = [1, 1, 1, 1]} : vector<2x10x8x256xbf16> to vector<2x8x8x256xbf16>
    %13 = tpu.concatenate %4, %5, %6, %7, %8, %9, %10, %11, %12 in 3 : vector<2x8x8x256xbf16>, vector<2x8x8x256xbf16>, vector<2x8x8x256xbf16>, vector<2x8x8x256xbf16>, vector<2x8x8x256xbf16>, vector<2x8x8x256xbf16>, vector<2x8x8x256xbf16>, vector<2x8x8x256xbf16>, vector<2x8x8x256xbf16> -> vector<2x8x8x2304xbf16>
    %14 = vector.shape_cast %13 : vector<2x8x8x2304xbf16> to vector<128x2304xbf16>
    %c0_3 = arith.constant 0 : index
    %c0_4 = arith.constant 0 : index
    %15 = vector.load %arg2[%c0_3, %c0_4] : memref<2304x128xbf16, #tpu.memory_space<vmem>>, vector<2304x128xbf16>
    %cst = arith.constant dense<0.000000e+00> : vector<128x128xf32>
    %16 = tpu.matmul %14, %15, %cst {dimension_numbers = #tpu.dot_dimension_numbers<[1], [0], [0], [1], [0, 0, 1, 1], [], []>} : vector<128x2304xbf16>, vector<2304x128xbf16>, vector<128x128xf32> -> vector<128x128xf32>
    %c0_5 = arith.constant 0 : index
    %c0_6 = arith.constant 0 : index
    %17 = vector.load %arg3[%c0_5, %c0_6] : memref<1x128xf32, #tpu.memory_space<vmem>>, vector<1x128xf32>
    %18 = vector.broadcast %17 : vector<1x128xf32> to vector<128x128xf32>
    %19 = arith.addf %16, %18 : vector<128x128xf32>
    %cst_7 = arith.constant 0.000000e+00 : f32
    %20 = vector.broadcast %cst_7 : f32 to vector<128x128xf32>
    %21 = arith.cmpf ogt, %19, %20 : vector<128x128xf32>
    %cst_8 = arith.constant 0.000000e+00 : f32
    %22 = vector.broadcast %cst_8 : f32 to vector<128x128xf32>
    %23 = arith.minimumf %19, %22 : vector<128x128xf32>
    %24 = math.exp %23 : vector<128x128xf32>
    %cst_9 = arith.constant 1.000000e+00 : f32
    %25 = vector.broadcast %cst_9 : f32 to vector<128x128xf32>
    %26 = arith.subf %24, %25 : vector<128x128xf32>
    %27 = arith.select %21, %19, %26 : vector<128x128xi1>, vector<128x128xf32>
    %28 = vector.shape_cast %27 : vector<128x128xf32> to vector<2x64x128xf32>
    %29 = vector.shape_cast %28 : vector<2x64x128xf32> to vector<2x8x8x128xf32>
    %30 = arith.truncf %29 : vector<2x8x8x128xf32> to vector<2x8x8x128xbf16>
    %c0_10 = arith.constant 0 : index
    %c0_11 = arith.constant 0 : index
    %c0_12 = arith.constant 0 : index
    %c0_13 = arith.constant 0 : index
    %31 = vector.load %arg4[%c0_10, %c0_11, %c0_12, %c0_13] : memref<2x8x8x128xbf16, #tpu.memory_space<vmem>>, vector<2x8x8x128xbf16>
    tpu.vector_store %arg4[%c0_10, %c0_11, %c0_12, %c0_13], %30 {strides = array<i32>} : memref<2x8x8x128xbf16, #tpu.memory_space<vmem>>, vector<2x8x8x128xbf16>,
    return
  }
  func.func @transform_0(%arg0: i32) -> (i32, i32, i32, i32) {
    %c0_i32 = arith.constant 0 : i32
    %c0_i32_0 = arith.constant 0 : i32
    %c0_i32_1 = arith.constant 0 : i32
    %c0_i32_2 = arith.constant 0 : i32
    %c0_i32_3 = arith.constant 0 : i32
    return %c0_i32, %c0_i32_0, %c0_i32_1, %c0_i32_2 : i32, i32, i32, i32
  }
  func.func @transform_1(%arg0: i32) -> (i32, i32) {
    %c0_i32 = arith.constant 0 : i32
    %c0_i32_0 = arith.constant 0 : i32
    return %c0_i32, %arg0 : i32, i32
  }
  func.func @transform_2(%arg0: i32) -> (i32, i32) {
    %c0_i32 = arith.constant 0 : i32
    %c0_i32_0 = arith.constant 0 : i32
    return %c0_i32, %arg0 : i32, i32
  }
  func.func @transform_3(%arg0: i32) -> (i32, i32, i32, i32) {
    %c0_i32 = arith.constant 0 : i32
    %c0_i32_0 = arith.constant 0 : i32
    %c0_i32_1 = arith.constant 0 : i32
    %c0_i32_2 = arith.constant 0 : i32
    return %c0_i32, %c0_i32_0, %c0_i32_1, %arg0 : i32, i32, i32, i32
  }
}

</mosaic_0001>

<llo_original>
// kernel: tpu_custom_call.1
$region0: #{tpu_custom_call.1}
  #allocation0 [shape = 'u32[]', space=smem, size = 0x4, offset = 0x4, fixed_abs, tag = 'smem constant byte address 0x4 - core index']
  #allocation1 [shape = 'u32[144,128]{1,0:T(1,128)}', space=vmem, size = 0x12000, scoped, tag = 'internal scratch']
  %s0 = inlined_call_operand.vmem [shape: bf16[2,10,10,256], index: 0, kind: input, shape index: {}]
  %s1 = inlined_call_operand.hbm [shape: bf16[2304,128], index: 1, kind: input, shape index: {}]
  %s2 = inlined_call_operand.vmem [shape: f32[1,128], index: 2, kind: input, shape index: {}]
  %s3 = inlined_call_operand.hbm [shape: bf16[2,8,8,128], index: 3, kind: output, shape index: {}]
  %s4 = sld [smem:[#allocation0]]
  $region26: #{tpu_custom_call.1} parent=0
    _
  %s6 = ssub.s32 1, %s4
  %s7 = scalar_select 0, %s6, %s4
  $region1: #{tpu_custom_call.1} parent=0
    #allocation2 [shape = 'u8[589824]{0}', space=vmem, size = 0x90000, scoped, tag = 'input window, operand 1, single buffered']
    #allocation3 [shape = 's32[1]{0}', space=sflag, size = 0x4, scoped, tag = 'scoped memory for tpu_custom_call.1']
    #allocation4 [shape = 's32[1]{0}', space=sflag, size = 0x4, scoped, tag = 'scoped memory for tpu_custom_call.1']
    #allocation5 [shape = 'u8[32768]{0}', space=vmem, size = 0x8000, scoped, tag = 'output window, operand 0, single buffered']
    %8 = vsyncpa [#allocation3], 0
    %9 = vsyncpa [#allocation4], 0
    // Predicated region
    $region2: #{tpu_custom_call.1} parent=1 // pred_check
      _
    $region3: #{tpu_custom_call.1} parent=1 // pred_check_branch
      %11 = sbr.rel (0) target = $region5
    $region4: #{tpu_custom_call.1} parent=1 // pred_region
      _
    $region5: #{tpu_custom_call.1} parent=1 // pred_fallthru
      _
    // Predicated region
    $region6: #{tpu_custom_call.1} parent=1 // pred_check
      _
    $region7: #{tpu_custom_call.1} parent=1 // pred_check_branch
      %13 = sbr.rel (0) target = $region9
    $region8: #{tpu_custom_call.1} parent=1 // pred_region
      %s15 = ssub.s32 18432, 18432
      %16 = vsyncadd [#allocation3], %s15
      %s17 = sshll.u32 [#allocation2], 4
      %s18 = int_to_ptr.vmem [resolvable:$true] %s17
      %23 = dma.hbm_to_vmem [thread:$0]  %s1, 18432, %s18, [#allocation3], 64, 64, 4
    $region9: #{tpu_custom_call.1} parent=1 // pred_fallthru
      _
    // Predicated region
    $region10: #{tpu_custom_call.1} parent=1 // pred_check
      _
    $region11: #{tpu_custom_call.1} parent=1 // pred_check_branch
      %25 = sbr.rel (0) target = $region13
    $region12: #{tpu_custom_call.1} parent=1 // pred_region
      _
    $region13: #{tpu_custom_call.1} parent=1 // pred_fallthru
      _
    // Predicated region
    $region14: #{tpu_custom_call.1} parent=1 // pred_check
      _
    $region15: #{tpu_custom_call.1} parent=1 // pred_check_branch
      %27 = sbr.rel (0) target = $region17
    $region16: #{tpu_custom_call.1} parent=1 // pred_region
      %28 = dma.done [#allocation3], 18432
    $region17: #{tpu_custom_call.1} parent=1 // pred_fallthru
      _
    %v30 = vld [vmem:[%s0] sm:$0xff]
    %v31 = vld [vmem:[%s0 + $0x8] sm:$0x11]
    %v32 = vld [vmem:[%s0 + $0x10] sm:$0xff]
    %v33 = vld [vmem:[%s0 + $0x18] sm:$0x11]
    %v34 = vld [vmem:[%s0 + $0x20] sm:$0xff]
    %v35 = vld [vmem:[%s0 + $0x28] sm:$0x11]
    %v36 = vld [vmem:[%s0 + $0x30] sm:$0xff]
    %v37 = vld [vmem:[%s0 + $0x38] sm:$0x11]
    %v38 = vld [vmem:[%s0 + $0x40] sm:$0xff]
    %v39 = vld [vmem:[%s0 + $0x48] sm:$0x11]
    %v40 = vld [vmem:[%s0 + $0x50] sm:$0xff]
    %v41 = vld [vmem:[%s0 + $0x58] sm:$0x11]
    %v42 = vld [vmem:[%s0 + $0x60] sm:$0xff]
    %v43 = vld [vmem:[%s0 + $0x68] sm:$0x11]
    %v44 = vld [vmem:[%s0 + $0x70] sm:$0xff]
    %v45 = vld [vmem:[%s0 + $0x78] sm:$0x11]
    %v46 = vld [vmem:[%s0 + $0x80] sm:$0xff]
    %v47 = vld [vmem:[%s0 + $0x88] sm:$0x11]
    %v48 = vld [vmem:[%s0 + $0x90] sm:$0xff]
    %v49 = vld [vmem:[%s0 + $0x98] sm:$0x11]
    %v50 = vld [vmem:[%s0 + $0xa0] sm:$0xff]
    %v51 = vld [vmem:[%s0 + $0xa8] sm:$0x11]
    %v52 = vld [vmem:[%s0 + $0xb0] sm:$0xff]
    %v53 = vld [vmem:[%s0 + $0xb8] sm:$0x11]
    %v54 = vld [vmem:[%s0 + $0xc0] sm:$0xff]
    %v55 = vld [vmem:[%s0 + $0xc8] sm:$0x11]
    %v56 = vld [vmem:[%s0 + $0xd0] sm:$0xff]
    %v57 = vld [vmem:[%s0 + $0xd8] sm:$0x11]
    %v58 = vld [vmem:[%s0 + $0xe0] sm:$0xff]
    %v59 = vld [vmem:[%s0 + $0xe8] sm:$0x11]
    %v60 = vld [vmem:[%s0 + $0xf0] sm:$0xff]
    %v61 = vld [vmem:[%s0 + $0xf8] sm:$0x11]
    %v62 = vld [vmem:[%s0 + $0x100] sm:$0xff]
    %v63 = vld [vmem:[%s0 + $0x108] sm:$0x11]
    %v64 = vld [vmem:[%s0 + $0x110] sm:$0xff]
    %v65 = vld [vmem:[%s0 + $0x118] sm:$0x11]
    %v66 = vld [vmem:[%s0 + $0x120] sm:$0xff]
    %v67 = vld [vmem:[%s0 + $0x128] sm:$0x11]
    %v68 = vld [vmem:[%s0 + $0x130] sm:$0xff]
    %v69 = vld [vmem:[%s0 + $0x138] sm:$0x11]
    %v86 = vunpack.c.l.b16 %v30
    %v87 = vunpack.c.h.b16 %v30
    %v88 = vunpack.c.l.b16 %v32
    %v89 = vunpack.c.h.b16 %v32
    %v90 = vunpack.c.l.b16 %v34
    %v91 = vunpack.c.h.b16 %v34
    %v92 = vunpack.c.l.b16 %v36
    %v93 = vunpack.c.h.b16 %v36
    %v94 = vunpack.c.l.b16 %v38
    %v95 = vunpack.c.h.b16 %v38
    %v96 = vunpack.c.l.b16 %v40
    %v97 = vunpack.c.h.b16 %v40
    %v98 = vunpack.c.l.b16 %v42
    %v99 = vunpack.c.h.b16 %v42
    %v100 = vunpack.c.l.b16 %v44
    %v101 = vunpack.c.h.b16 %v44
    %v102 = vunpack.c.l.b16 %v50
    %v103 = vunpack.c.h.b16 %v50
    %v104 = vunpack.c.l.b16 %v52
    %v105 = vunpack.c.h.b16 %v52
    %v106 = vunpack.c.l.b16 %v54
    %v107 = vunpack.c.h.b16 %v54
    %v108 = vunpack.c.l.b16 %v56
    %v109 = vunpack.c.h.b16 %v56
    %v110 = vunpack.c.l.b16 %v58
    %v111 = vunpack.c.h.b16 %v58
    %v112 = vunpack.c.l.b16 %v60
    %v113 = vunpack.c.h.b16 %v60
    %v114 = vunpack.c.l.b16 %v62
    %v115 = vunpack.c.h.b16 %v62
    %v116 = vunpack.c.l.b16 %v64
    %v117 = vunpack.c.h.b16 %v64
    %v134 = vunpack.c.l.b16 %v31
    %v135 = vunpack.c.h.b16 %v31
    %v136 = vunpack.c.l.b16 %v33
    %v137 = vunpack.c.h.b16 %v33
    %v138 = vunpack.c.l.b16 %v35
    %v139 = vunpack.c.h.b16 %v35
    %v140 = vunpack.c.l.b16 %v37
    %v141 = vunpack.c.h.b16 %v37
    %v142 = vunpack.c.l.b16 %v39
    %v143 = vunpack.c.h.b16 %v39
    %v144 = vunpack.c.l.b16 %v41
    %v145 = vunpack.c.h.b16 %v41
    %v146 = vunpack.c.l.b16 %v43
    %v147 = vunpack.c.h.b16 %v43
    %v148 = vunpack.c.l.b16 %v45
    %v149 = vunpack.c.h.b16 %v45
    %v150 = vunpack.c.l.b16 %v51
    %v151 = vunpack.c.h.b16 %v51
    %v152 = vunpack.c.l.b16 %v53
    %v153 = vunpack.c.h.b16 %v53
    %v154 = vunpack.c.l.b16 %v55
    %v155 = vunpack.c.h.b16 %v55
    %v156 = vunpack.c.l.b16 %v57
    %v157 = vunpack.c.h.b16 %v57
    %v158 = vunpack.c.l.b16 %v59
    %v159 = vunpack.c.h.b16 %v59
    %v160 = vunpack.c.l.b16 %v61
    %v161 = vunpack.c.h.b16 %v61
    %v162 = vunpack.c.l.b16 %v63
    %v163 = vunpack.c.h.b16 %v63
    %v164 = vunpack.c.l.b16 %v65
    %v165 = vunpack.c.h.b16 %v65
    %v166 = vpack.c.b16 %v134, %v86
    %v167 = vpack.c.b16 %v135, %v87
    %v168 = vpack.c.b16 %v136, %v88
    %v169 = vpack.c.b16 %v137, %v89
    %v170 = vpack.c.b16 %v138, %v90
    %v171 = vpack.c.b16 %v139, %v91
    %v172 = vpack.c.b16 %v140, %v92
    %v173 = vpack.c.b16 %v141, %v93
    %v174 = vpack.c.b16 %v142, %v94
    %v175 = vpack.c.b16 %v143, %v95
    %v176 = vpack.c.b16 %v144, %v96
    %v177 = vpack.c.b16 %v145, %v97
    %v178 = vpack.c.b16 %v146, %v98
    %v179 = vpack.c.b16 %v147, %v99
    %v180 = vpack.c.b16 %v148, %v100
    %v181 = vpack.c.b16 %v149, %v101
    %v182 = vpack.c.b16 %v150, %v102
    %v183 = vpack.c.b16 %v151, %v103
    %v184 = vpack.c.b16 %v152, %v104
    %v185 = vpack.c.b16 %v153, %v105
    %v186 = vpack.c.b16 %v154, %v106
    %v187 = vpack.c.b16 %v155, %v107
    %v188 = vpack.c.b16 %v156, %v108
    %v189 = vpack.c.b16 %v157, %v109
    %v190 = vpack.c.b16 %v158, %v110
    %v191 = vpack.c.b16 %v159, %v111
    %v192 = vpack.c.b16 %v160, %v112
    %v193 = vpack.c.b16 %v161, %v113
    %v194 = vpack.c.b16 %v162, %v114
    %v195 = vpack.c.b16 %v163, %v115
    %v196 = vpack.c.b16 %v164, %v116
    %v197 = vpack.c.b16 %v165, %v117
    %v199 = vshrl.u32 %v166, 16
    %v201 = vshll.u32 %v166, 16
    %v203 = vrot.slane %v201, 1
    %v204 = vor.u32 %v199, %v203
    %v206 = vshrl.u32 %v167, 16
    %v208 = vshll.u32 %v167, 16
    %v210 = vrot.slane %v208, 1
    %v211 = vor.u32 %v206, %v210
    %v213 = vshrl.u32 %v168, 16
    %v215 = vshll.u32 %v168, 16
    %v217 = vrot.slane %v215, 1
    %v218 = vor.u32 %v213, %v217
    %v220 = vshrl.u32 %v169, 16
    %v222 = vshll.u32 %v169, 16
    %v224 = vrot.slane %v222, 1
    %v225 = vor.u32 %v220, %v224
    %v227 = vshrl.u32 %v170, 16
    %v229 = vshll.u32 %v170, 16
    %v231 = vrot.slane %v229, 1
    %v232 = vor.u32 %v227, %v231
    %v234 = vshrl.u32 %v171, 16
    %v236 = vshll.u32 %v171, 16
    %v238 = vrot.slane %v236, 1
    %v239 = vor.u32 %v234, %v238
    %v241 = vshrl.u32 %v172, 16
    %v243 = vshll.u32 %v172, 16
    %v245 = vrot.slane %v243, 1
    %v246 = vor.u32 %v241, %v245
    %v248 = vshrl.u32 %v173, 16
    %v250 = vshll.u32 %v173, 16
    %v252 = vrot.slane %v250, 1
    %v253 = vor.u32 %v248, %v252
    %v255 = vshrl.u32 %v174, 16
    %v257 = vshll.u32 %v174, 16
    %v259 = vrot.slane %v257, 1
    %v260 = vor.u32 %v255, %v259
    %v262 = vshrl.u32 %v175, 16
    %v264 = vshll.u32 %v175, 16
    %v266 = vrot.slane %v264, 1
    %v267 = vor.u32 %v262, %v266
    %v269 = vshrl.u32 %v176, 16
    %v271 = vshll.u32 %v176, 16
    %v273 = vrot.slane %v271, 1
    %v274 = vor.u32 %v269, %v273
    %v276 = vshrl.u32 %v177, 16
    %v278 = vshll.u32 %v177, 16
    %v280 = vrot.slane %v278, 1
    %v281 = vor.u32 %v276, %v280
    %v283 = vshrl.u32 %v178, 16
    %v285 = vshll.u32 %v178, 16
    %v287 = vrot.slane %v285, 1
    %v288 = vor.u32 %v283, %v287
    %v290 = vshrl.u32 %v179, 16
    %v292 = vshll.u32 %v179, 16
    %v294 = vrot.slane %v292, 1
    %v295 = vor.u32 %v290, %v294
    %v297 = vshrl.u32 %v180, 16
    %v299 = vshll.u32 %v180, 16
    %v301 = vrot.slane %v299, 1
    %v302 = vor.u32 %v297, %v301
    %v304 = vshrl.u32 %v181, 16
    %v306 = vshll.u32 %v181, 16
    %v308 = vrot.slane %v306, 1
    %v309 = vor.u32 %v304, %v308
    %v311 = vshrl.u32 %v182, 16
    %v313 = vshll.u32 %v182, 16
    %v315 = vrot.slane %v313, 1
    %v316 = vor.u32 %v311, %v315
    %v318 = vshrl.u32 %v183, 16
    %v320 = vshll.u32 %v183, 16
    %v322 = vrot.slane %v320, 1
    %v323 = vor.u32 %v318, %v322
    %v325 = vshrl.u32 %v184, 16
    %v327 = vshll.u32 %v184, 16
    %v329 = vrot.slane %v327, 1
    %v330 = vor.u32 %v325, %v329
    %v332 = vshrl.u32 %v185, 16
    %v334 = vshll.u32 %v185, 16
    %v336 = vrot.slane %v334, 1
    %v337 = vor.u32 %v332, %v336
    %v339 = vshrl.u32 %v186, 16
    %v341 = vshll.u32 %v186, 16
    %v343 = vrot.slane %v341, 1
    %v344 = vor.u32 %v339, %v343
    %v346 = vshrl.u32 %v187, 16
    %v348 = vshll.u32 %v187, 16
    %v350 = vrot.slane %v348, 1
    %v351 = vor.u32 %v346, %v350
    %v353 = vshrl.u32 %v188, 16
    %v355 = vshll.u32 %v188, 16
    %v357 = vrot.slane %v355, 1
    %v358 = vor.u32 %v353, %v357
    %v360 = vshrl.u32 %v189, 16
    %v362 = vshll.u32 %v189, 16
    %v364 = vrot.slane %v362, 1
    %v365 = vor.u32 %v360, %v364
    %v367 = vshrl.u32 %v190, 16
    %v369 = vshll.u32 %v190, 16
    %v371 = vrot.slane %v369, 1
    %v372 = vor.u32 %v367, %v371
    %v374 = vshrl.u32 %v191, 16
    %v376 = vshll.u32 %v191, 16
    %v378 = vrot.slane %v376, 1
    %v379 = vor.u32 %v374, %v378
    %v381 = vshrl.u32 %v192, 16
    %v383 = vshll.u32 %v192, 16
    %v385 = vrot.slane %v383, 1
    %v386 = vor.u32 %v381, %v385
    %v388 = vshrl.u32 %v193, 16
    %v390 = vshll.u32 %v193, 16
    %v392 = vrot.slane %v390, 1
    %v393 = vor.u32 %v388, %v392
    %v395 = vshrl.u32 %v194, 16
    %v397 = vshll.u32 %v194, 16
    %v399 = vrot.slane %v397, 1
    %v400 = vor.u32 %v395, %v399
    %v402 = vshrl.u32 %v195, 16
    %v404 = vshll.u32 %v195, 16
    %v406 = vrot.slane %v404, 1
    %v407 = vor.u32 %v402, %v406
    %v409 = vshrl.u32 %v196, 16
    %v411 = vshll.u32 %v196, 16
    %v413 = vrot.slane %v411, 1
    %v414 = vor.u32 %v409, %v413
    %v416 = vshrl.u32 %v197, 16
    %v418 = vshll.u32 %v197, 16
    %v420 = vrot.slane %v418, 1
    %v421 = vor.u32 %v416, %v420
    %v422 = vrot.slane %v166, 1
    %v423 = vrot.slane %v167, 1
    %v424 = vrot.slane %v168, 1
    %v425 = vrot.slane %v169, 1
    %v426 = vrot.slane %v170, 1
    %v427 = vrot.slane %v171, 1
    %v428 = vrot.slane %v172, 1
    %v429 = vrot.slane %v173, 1
    %v430 = vrot.slane %v174, 1
    %v431 = vrot.slane %v175, 1
    %v432 = vrot.slane %v176, 1
    %v433 = vrot.slane %v177, 1
    %v434 = vrot.slane %v178, 1
    %v435 = vrot.slane %v179, 1
    %v436 = vrot.slane %v180, 1
    %v437 = vrot.slane %v181, 1
    %v438 = vrot.slane %v182, 1
    %v439 = vrot.slane %v183, 1
    %v440 = vrot.slane %v184, 1
    %v441 = vrot.slane %v185, 1
    %v442 = vrot.slane %v186, 1
    %v443 = vrot.slane %v187, 1
    %v444 = vrot.slane %v188, 1
    %v445 = vrot.slane %v189, 1
    %v446 = vrot.slane %v190, 1
    %v447 = vrot.slane %v191, 1
    %v448 = vrot.slane %v192, 1
    %v449 = vrot.slane %v193, 1
    %v450 = vrot.slane %v194, 1
    %v451 = vrot.slane %v195, 1
    %v452 = vrot.slane %v196, 1
    %v453 = vrot.slane %v197, 1
    %v456 = vunpack.c.l.b16 %v46
    %v457 = vunpack.c.h.b16 %v46
    %v458 = vunpack.c.l.b16 %v66
    %v459 = vunpack.c.h.b16 %v66
    %v462 = vunpack.c.l.b16 %v47
    %v463 = vunpack.c.h.b16 %v47
    %v464 = vunpack.c.l.b16 %v67
    %v465 = vunpack.c.h.b16 %v67
    %v466 = vpack.c.b16 %v462, %v456
    %v467 = vpack.c.b16 %v463, %v457
    %v468 = vpack.c.b16 %v464, %v458
    %v469 = vpack.c.b16 %v465, %v459
    %v471 = vshrl.u32 %v466, 16
    %v473 = vshll.u32 %v466, 16
    %v475 = vrot.slane %v473, 1
    %v476 = vor.u32 %v471, %v475
    %v478 = vshrl.u32 %v467, 16
    %v480 = vshll.u32 %v467, 16
    %v482 = vrot.slane %v480, 1
    %v483 = vor.u32 %v478, %v482
    %v485 = vshrl.u32 %v468, 16
    %v487 = vshll.u32 %v468, 16
    %v489 = vrot.slane %v487, 1
    %v490 = vor.u32 %v485, %v489
    %v492 = vshrl.u32 %v469, 16
    %v494 = vshll.u32 %v469, 16
    %v496 = vrot.slane %v494, 1
    %v497 = vor.u32 %v492, %v496
    %v498 = vrot.slane %v466, 1
    %v499 = vrot.slane %v467, 1
    %v500 = vrot.slane %v468, 1
    %v501 = vrot.slane %v469, 1
    %v504 = vunpack.c.l.b16 %v48
    %v505 = vunpack.c.h.b16 %v48
    %v506 = vunpack.c.l.b16 %v68
    %v507 = vunpack.c.h.b16 %v68
    %v510 = vunpack.c.l.b16 %v49
    %v511 = vunpack.c.h.b16 %v49
    %v512 = vunpack.c.l.b16 %v69
    %v513 = vunpack.c.h.b16 %v69
    %v514 = vpack.c.b16 %v510, %v504
    %v515 = vpack.c.b16 %v511, %v505
    %v516 = vpack.c.b16 %v512, %v506
    %v517 = vpack.c.b16 %v513, %v507
    %v519 = vshrl.u32 %v514, 16
    %v521 = vshll.u32 %v514, 16
    %v523 = vrot.slane %v521, 1
    %v524 = vor.u32 %v519, %v523
    %v526 = vshrl.u32 %v515, 16
    %v528 = vshll.u32 %v515, 16
    %v530 = vrot.slane %v528, 1
    %v531 = vor.u32 %v526, %v530
    %v533 = vshrl.u32 %v516, 16
    %v535 = vshll.u32 %v516, 16
    %v537 = vrot.slane %v535, 1
    %v538 = vor.u32 %v533, %v537
    %v540 = vshrl.u32 %v517, 16
    %v542 = vshll.u32 %v517, 16
    %v544 = vrot.slane %v542, 1
    %v545 = vor.u32 %v540, %v544
    %v546 = vrot.slane %v514, 1
    %v547 = vrot.slane %v515, 1
    %v548 = vrot.slane %v516, 1
    %v549 = vrot.slane %v517, 1
    %v550 = vunpack.c.l.b16 %v204
    %v551 = vunpack.c.l.b16 %v211
    %v552 = vunpack.c.l.b16 %v422
    %v553 = vunpack.c.l.b16 %v423
    %v554 = vunpack.c.l.b16 %v218
    %v555 = vunpack.c.l.b16 %v225
    %v556 = vunpack.c.l.b16 %v424
    %v557 = vunpack.c.l.b16 %v425
    %v558 = vunpack.c.l.b16 %v232
    %v559 = vunpack.c.l.b16 %v239
    %v560 = vunpack.c.l.b16 %v426
    %v561 = vunpack.c.l.b16 %v427
    %v562 = vunpack.c.l.b16 %v246
    %v563 = vunpack.c.l.b16 %v253
    %v564 = vunpack.c.l.b16 %v428
    %v565 = vunpack.c.l.b16 %v429
    %v566 = vunpack.c.l.b16 %v260
    %v567 = vunpack.c.l.b16 %v267
    %v568 = vunpack.c.l.b16 %v430
    %v569 = vunpack.c.l.b16 %v431
    %v570 = vunpack.c.l.b16 %v274
    %v571 = vunpack.c.l.b16 %v281
    %v572 = vunpack.c.l.b16 %v432
    %v573 = vunpack.c.l.b16 %v433
    %v574 = vunpack.c.l.b16 %v288
    %v575 = vunpack.c.l.b16 %v295
    %v576 = vunpack.c.l.b16 %v434
    %v577 = vunpack.c.l.b16 %v435
    %v578 = vunpack.c.l.b16 %v302
    %v579 = vunpack.c.l.b16 %v309
    %v580 = vunpack.c.l.b16 %v436
    %v581 = vunpack.c.l.b16 %v437
    %v582 = vunpack.c.l.b16 %v476
    %v583 = vunpack.c.l.b16 %v483
    %v584 = vunpack.c.l.b16 %v498
    %v585 = vunpack.c.l.b16 %v499
    %v586 = vunpack.c.l.b16 %v524
    %v587 = vunpack.c.l.b16 %v531
    %v588 = vunpack.c.l.b16 %v546
    %v589 = vunpack.c.l.b16 %v547
    %v590 = vunpack.c.l.b16 %v316
    %v591 = vunpack.c.l.b16 %v323
    %v592 = vunpack.c.l.b16 %v438
    %v593 = vunpack.c.l.b16 %v439
    %v594 = vunpack.c.l.b16 %v330
    %v595 = vunpack.c.l.b16 %v337
    %v596 = vunpack.c.l.b16 %v440
    %v597 = vunpack.c.l.b16 %v441
    %v598 = vunpack.c.l.b16 %v344
    %v599 = vunpack.c.l.b16 %v351
    %v600 = vunpack.c.l.b16 %v442
    %v601 = vunpack.c.l.b16 %v443
    %v602 = vunpack.c.l.b16 %v358
    %v603 = vunpack.c.l.b16 %v365
    %v604 = vunpack.c.l.b16 %v444
    %v605 = vunpack.c.l.b16 %v445
    %v606 = vunpack.c.l.b16 %v372
    %v607 = vunpack.c.l.b16 %v379
    %v608 = vunpack.c.l.b16 %v446
    %v609 = vunpack.c.l.b16 %v447
    %v610 = vunpack.c.l.b16 %v386
    %v611 = vunpack.c.l.b16 %v393
    %v612 = vunpack.c.l.b16 %v448
    %v613 = vunpack.c.l.b16 %v449
    %v614 = vunpack.c.l.b16 %v400
    %v615 = vunpack.c.l.b16 %v407
    %v616 = vunpack.c.l.b16 %v450
    %v617 = vunpack.c.l.b16 %v451
    %v618 = vunpack.c.l.b16 %v414
    %v619 = vunpack.c.l.b16 %v421
    %v620 = vunpack.c.l.b16 %v452
    %v621 = vunpack.c.l.b16 %v453
    %v622 = vunpack.c.l.b16 %v490
    %v623 = vunpack.c.l.b16 %v497
    %v624 = vunpack.c.l.b16 %v500
    %v625 = vunpack.c.l.b16 %v501
    %v626 = vunpack.c.l.b16 %v538
    %v627 = vunpack.c.l.b16 %v545
    %v628 = vunpack.c.l.b16 %v548
    %v629 = vunpack.c.l.b16 %v549
    %v630 = vld [vmem:[#allocation2] sm:$0xf]
    %v631 = vld [vmem:[#allocation2 + $0x4] sm:$0xf]
    %v632 = vld [vmem:[#allocation2 + $0x8] sm:$0xf]
    %v633 = vld [vmem:[#allocation2 + $0xc] sm:$0xf]
    %v634 = vld [vmem:[#allocation2 + $0x10] sm:$0xf]
    %v635 = vld [vmem:[#allocation2 + $0x14] sm:$0xf]
    %v636 = vld [vmem:[#allocation2 + $0x18] sm:$0xf]
    %v637 = vld [vmem:[#allocation2 + $0x1c] sm:$0xf]
    %v638 = vld [vmem:[#allocation2 + $0x20] sm:$0xf]
    %v639 = vld [vmem:[#allocation2 + $0x24] sm:$0xf]
    %v640 = vld [vmem:[#allocation2 + $0x28] sm:$0xf]
    %v641 = vld [vmem:[#allocation2 + $0x2c] sm:$0xf]
    %v642 = vld [vmem:[#allocation2 + $0x30] sm:$0xf]
    %v643 = vld [vmem:[#allocation2 + $0x34] sm:$0xf]
    %v644 = vld [vmem:[#allocation2 + $0x38] sm:$0xf]
    %v645 = vld [vmem:[#allocation2 + $0x3c] sm:$0xf]
    %v646 = vld [vmem:[#allocation2 + $0x40] sm:$0xf]
    %v647 = vld [vmem:[#allocation2 + $0x44] sm:$0xf]
    %v648 = vld [vmem:[#allocation2 + $0x48] sm:$0xf]
    %v649 = vld [vmem:[#allocation2 + $0x4c] sm:$0xf]
    %v650 = vld [vmem:[#allocation2 + $0x50] sm:$0xf]
    %v651 = vld [vmem:[#allocation2 + $0x54] sm:$0xf]
    %v652 = vld [vmem:[#allocation2 + $0x58] sm:$0xf]
    %v653 = vld [vmem:[#allocation2 + $0x5c] sm:$0xf]
    %v654 = vld [vmem:[#allocation2 + $0x60] sm:$0xf]
    %v655 = vld [vmem:[#allocation2 + $0x64] sm:$0xf]
    %v656 = vld [vmem:[#allocation2 + $0x68] sm:$0xf]
    %v657 = vld [vmem:[#allocation2 + $0x6c] sm:$0xf]
    %v658 = vld [vmem:[#allocation2 + $0x70] sm:$0xf]
    %v659 = vld [vmem:[#allocation2 + $0x74] sm:$0xf]
    %v660 = vld [vmem:[#allocation2 + $0x78] sm:$0xf]
    %v661 = vld [vmem:[#allocation2 + $0x7c] sm:$0xf]
    %v662 = vld [vmem:[#allocation2 + $0x80] sm:$0xf]
    %v663 = vld [vmem:[#allocation2 + $0x84] sm:$0xf]
    %v664 = vld [vmem:[#allocation2 + $0x88] sm:$0xf]
    %v665 = vld [vmem:[#allocation2 + $0x8c] sm:$0xf]
    %v666 = vld [vmem:[#allocation2 + $0x90] sm:$0xf]
    %v667 = vld [vmem:[#allocation2 + $0x94] sm:$0xf]
    %v668 = vld [vmem:[#allocation2 + $0x98] sm:$0xf]
    %v669 = vld [vmem:[#allocation2 + $0x9c] sm:$0xf]
    %v670 = vld [vmem:[#allocation2 + $0xa0] sm:$0xf]
    %v671 = vld [vmem:[#allocation2 + $0xa4] sm:$0xf]
    %v672 = vld [vmem:[#allocation2 + $0xa8] sm:$0xf]
    %v673 = vld [vmem:[#allocation2 + $0xac] sm:$0xf]
    %v674 = vld [vmem:[#allocation2 + $0xb0] sm:$0xf]
    %v675 = vld [vmem:[#allocation2 + $0xb4] sm:$0xf]
    %v676 = vld [vmem:[#allocation2 + $0xb8] sm:$0xf]
    %v677 = vld [vmem:[#allocation2 + $0xbc] sm:$0xf]
    %v678 = vld [vmem:[#allocation2 + $0xc0] sm:$0xf]
    %v679 = vld [vmem:[#allocation2 + $0xc4] sm:$0xf]
    %v680 = vld [vmem:[#allocation2 + $0xc8] sm:$0xf]
    %v681 = vld [vmem:[#allocation2 + $0xcc] sm:$0xf]
    %v682 = vld [vmem:[#allocation2 + $0xd0] sm:$0xf]
    %v683 = vld [vmem:[#allocation2 + $0xd4] sm:$0xf]
    %v684 = vld [vmem:[#allocation2 + $0xd8] sm:$0xf]
    %v685 = vld [vmem:[#allocation2 + $0xdc] sm:$0xf]
    %v686 = vld [vmem:[#allocation2 + $0xe0] sm:$0xf]
    %v687 = vld [vmem:[#allocation2 + $0xe4] sm:$0xf]
    %v688 = vld [vmem:[#allocation2 + $0xe8] sm:$0xf]
    %v689 = vld [vmem:[#allocation2 + $0xec] sm:$0xf]
    %v690 = vld [vmem:[#allocation2 + $0xf0] sm:$0xf]
    %v691 = vld [vmem:[#allocation2 + $0xf4] sm:$0xf]
    %v692 = vld [vmem:[#allocation2 + $0xf8] sm:$0xf]
    %v693 = vld [vmem:[#allocation2 + $0xfc] sm:$0xf]
    %v694 = vld [vmem:[#allocation2 + $0x100] sm:$0xf]
    %v695 = vld [vmem:[#allocation2 + $0x104] sm:$0xf]
    %v696 = vld [vmem:[#allocation2 + $0x108] sm:$0xf]
    %v697 = vld [vmem:[#allocation2 + $0x10c] sm:$0xf]
    %v698 = vld [vmem:[#allocation2 + $0x110] sm:$0xf]
    %v699 = vld [vmem:[#allocation2 + $0x114] sm:$0xf]
    %v700 = vld [vmem:[#allocation2 + $0x118] sm:$0xf]
    %v701 = vld [vmem:[#allocation2 + $0x11c] sm:$0xf]
    %v702 = vld [vmem:[#allocation2 + $0x120] sm:$0xf]
    %v703 = vld [vmem:[#allocation2 + $0x124] sm:$0xf]
    %v704 = vld [vmem:[#allocation2 + $0x128] sm:$0xf]
    %v705 = vld [vmem:[#allocation2 + $0x12c] sm:$0xf]
    %v706 = vld [vmem:[#allocation2 + $0x130] sm:$0xf]
    %v707 = vld [vmem:[#allocation2 + $0x134] sm:$0xf]
    %v708 = vld [vmem:[#allocation2 + $0x138] sm:$0xf]
    %v709 = vld [vmem:[#allocation2 + $0x13c] sm:$0xf]
    %v710 = vld [vmem:[#allocation2 + $0x140] sm:$0xf]
    %v711 = vld [vmem:[#allocation2 + $0x144] sm:$0xf]
    %v712 = vld [vmem:[#allocation2 + $0x148] sm:$0xf]
    %v713 = vld [vmem:[#allocation2 + $0x14c] sm:$0xf]
    %v714 = vld [vmem:[#allocation2 + $0x150] sm:$0xf]
    %v715 = vld [vmem:[#allocation2 + $0x154] sm:$0xf]
    %v716 = vld [vmem:[#allocation2 + $0x158] sm:$0xf]
    %v717 = vld [vmem:[#allocation2 + $0x15c] sm:$0xf]
    %v718 = vld [vmem:[#allocation2 + $0x160] sm:$0xf]
    %v719 = vld [vmem:[#allocation2 + $0x164] sm:$0xf]
    %v720 = vld [vmem:[#allocation2 + $0x168] sm:$0xf]
    %v721 = vld [vmem:[#allocation2 + $0x16c] sm:$0xf]
    %v722 = vld [vmem:[#allocation2 + $0x170] sm:$0xf]
    %v723 = vld [vmem:[#allocation2 + $0x174] sm:$0xf]
    %v724 = vld [vmem:[#allocation2 + $0x178] sm:$0xf]
    %v725 = vld [vmem:[#allocation2 + $0x17c] sm:$0xf]
    %v726 = vld [vmem:[#allocation2 + $0x180] sm:$0xf]
    %v727 = vld [vmem:[#allocation2 + $0x184] sm:$0xf]
    %v728 = vld [vmem:[#allocation2 + $0x188] sm:$0xf]
    %v729 = vld [vmem:[#allocation2 + $0x18c] sm:$0xf]
    %v730 = vld [vmem:[#allocation2 + $0x190] sm:$0xf]
    %v731 = vld [vmem:[#allocation2 + $0x194] sm:$0xf]
    %v732 = vld [vmem:[#allocation2 + $0x198] sm:$0xf]
    %v733 = vld [vmem:[#allocation2 + $0x19c] sm:$0xf]
    %v734 = vld [vmem:[#allocation2 + $0x1a0] sm:$0xf]
    %v735 = vld [vmem:[#allocation2 + $0x1a4] sm:$0xf]
    %v736 = vld [vmem:[#allocation2 + $0x1a8] sm:$0xf]
    %v737 = vld [vmem:[#allocation2 + $0x1ac] sm:$0xf]
    %v738 = vld [vmem:[#allocation2 + $0x1b0] sm:$0xf]
    %v739 = vld [vmem:[#allocation2 + $0x1b4] sm:$0xf]
    %v740 = vld [vmem:[#allocation2 + $0x1b8] sm:$0xf]
    %v741 = vld [vmem:[#allocation2 + $0x1bc] sm:$0xf]
    %v742 = vld [vmem:[#allocation2 + $0x1c0] sm:$0xf]
    %v743 = vld [vmem:[#allocation2 + $0x1c4] sm:$0xf]
    %v744 = vld [vmem:[#allocation2 + $0x1c8] sm:$0xf]
    %v745 = vld [vmem:[#allocation2 + $0x1cc] sm:$0xf]
    %v746 = vld [vmem:[#allocation2 + $0x1d0] sm:$0xf]
    %v747 = vld [vmem:[#allocation2 + $0x1d4] sm:$0xf]
    %v748 = vld [vmem:[#allocation2 + $0x1d8] sm:$0xf]
    %v749 = vld [vmem:[#allocation2 + $0x1dc] sm:$0xf]
    %v750 = vld [vmem:[#allocation2 + $0x1e0] sm:$0xf]
    %v751 = vld [vmem:[#allocation2 + $0x1e4] sm:$0xf]
    %v752 = vld [vmem:[#allocation2 + $0x1e8] sm:$0xf]
    %v753 = vld [vmem:[#allocation2 + $0x1ec] sm:$0xf]
    %v754 = vld [vmem:[#allocation2 + $0x1f0] sm:$0xf]
    %v755 = vld [vmem:[#allocation2 + $0x1f4] sm:$0xf]
    %v756 = vld [vmem:[#allocation2 + $0x1f8] sm:$0xf]
    %v757 = vld [vmem:[#allocation2 + $0x1fc] sm:$0xf]
    %v758 = vld [vmem:[#allocation2 + $0x200] sm:$0xf]
    %v759 = vld [vmem:[#allocation2 + $0x204] sm:$0xf]
    %v760 = vld [vmem:[#allocation2 + $0x208] sm:$0xf]
    %v761 = vld [vmem:[#allocation2 + $0x20c] sm:$0xf]
    %v762 = vld [vmem:[#allocation2 + $0x210] sm:$0xf]
    %v763 = vld [vmem:[#allocation2 + $0x214] sm:$0xf]
    %v764 = vld [vmem:[#allocation2 + $0x218] sm:$0xf]
    %v765 = vld [vmem:[#allocation2 + $0x21c] sm:$0xf]
    %v766 = vld [vmem:[#allocation2 + $0x220] sm:$0xf]
    %v767 = vld [vmem:[#allocation2 + $0x224] sm:$0xf]
    %v768 = vld [vmem:[#allocation2 + $0x228] sm:$0xf]
    %v769 = vld [vmem:[#allocation2 + $0x22c] sm:$0xf]
    %v770 = vld [vmem:[#allocation2 + $0x230] sm:$0xf]
    %v771 = vld [vmem:[#allocation2 + $0x234] sm:$0xf]
    %v772 = vld [vmem:[#allocation2 + $0x238] sm:$0xf]
    %v773 = vld [vmem:[#allocation2 + $0x23c] sm:$0xf]
    %v774 = vld [vmem:[#allocation2 + $0x240] sm:$0xf]
    %v775 = vld [vmem:[#allocation2 + $0x244] sm:$0xf]
    %v776 = vld [vmem:[#allocation2 + $0x248] sm:$0xf]
    %v777 = vld [vmem:[#allocation2 + $0x24c] sm:$0xf]
    %v778 = vld [vmem:[#allocation2 + $0x250] sm:$0xf]
    %v779 = vld [vmem:[#allocation2 + $0x254] sm:$0xf]
    %v780 = vld [vmem:[#allocation2 + $0x258] sm:$0xf]
    %v781 = vld [vmem:[#allocation2 + $0x25c] sm:$0xf]
    %v782 = vld [vmem:[#allocation2 + $0x260] sm:$0xf]
    %v783 = vld [vmem:[#allocation2 + $0x264] sm:$0xf]
    %v784 = vld [vmem:[#allocation2 + $0x268] sm:$0xf]
    %v785 = vld [vmem:[#allocation2 + $0x26c] sm:$0xf]
    %v786 = vld [vmem:[#allocation2 + $0x270] sm:$0xf]
    %v787 = vld [vmem:[#allocation2 + $0x274] sm:$0xf]
    %v788 = vld [vmem:[#allocation2 + $0x278] sm:$0xf]
    %v789 = vld [vmem:[#allocation2 + $0x27c] sm:$0xf]
    %v790 = vld [vmem:[#allocation2 + $0x280] sm:$0xf]
    %v791 = vld [vmem:[#allocation2 + $0x284] sm:$0xf]
    %v792 = vld [vmem:[#allocation2 + $0x288] sm:$0xf]
    %v793 = vld [vmem:[#allocation2 + $0x28c] sm:$0xf]
    %v794 = vld [vmem:[#allocation2 + $0x290] sm:$0xf]
    %v795 = vld [vmem:[#allocation2 + $0x294] sm:$0xf]
    %v796 = vld [vmem:[#allocation2 + $0x298] sm:$0xf]
    %v797 = vld [vmem:[#allocation2 + $0x29c] sm:$0xf]
    %v798 = vld [vmem:[#allocation2 + $0x2a0] sm:$0xf]
    %v799 = vld [vmem:[#allocation2 + $0x2a4] sm:$0xf]
    %v800 = vld [vmem:[#allocation2 + $0x2a8] sm:$0xf]
    %v801 = vld [vmem:[#allocation2 + $0x2ac] sm:$0xf]
    %v802 = vld [vmem:[#allocation2 + $0x2b0] sm:$0xf]
    %v803 = vld [vmem:[#allocation2 + $0x2b4] sm:$0xf]
    %v804 = vld [vmem:[#allocation2 + $0x2b8] sm:$0xf]
    %v805 = vld [vmem:[#allocation2 + $0x2bc] sm:$0xf]
    %v806 = vld [vmem:[#allocation2 + $0x2c0] sm:$0xf]
    %v807 = vld [vmem:[#allocation2 + $0x2c4] sm:$0xf]
    %v808 = vld [vmem:[#allocation2 + $0x2c8] sm:$0xf]
    %v809 = vld [vmem:[#allocation2 + $0x2cc] sm:$0xf]
    %v810 = vld [vmem:[#allocation2 + $0x2d0] sm:$0xf]
    %v811 = vld [vmem:[#allocation2 + $0x2d4] sm:$0xf]
    %v812 = vld [vmem:[#allocation2 + $0x2d8] sm:$0xf]
    %v813 = vld [vmem:[#allocation2 + $0x2dc] sm:$0xf]
    %v814 = vld [vmem:[#allocation2 + $0x2e0] sm:$0xf]
    %v815 = vld [vmem:[#allocation2 + $0x2e4] sm:$0xf]
    %v816 = vld [vmem:[#allocation2 + $0x2e8] sm:$0xf]
    %v817 = vld [vmem:[#allocation2 + $0x2ec] sm:$0xf]
    %v818 = vld [vmem:[#allocation2 + $0x2f0] sm:$0xf]
    %v819 = vld [vmem:[#allocation2 + $0x2f4] sm:$0xf]
    %v820 = vld [vmem:[#allocation2 + $0x2f8] sm:$0xf]
    %v821 = vld [vmem:[#allocation2 + $0x2fc] sm:$0xf]
    %v822 = vld [vmem:[#allocation2 + $0x300] sm:$0xf]
    %v823 = vld [vmem:[#allocation2 + $0x304] sm:$0xf]
    %v824 = vld [vmem:[#allocation2 + $0x308] sm:$0xf]
    %v825 = vld [vmem:[#allocation2 + $0x30c] sm:$0xf]
    %v826 = vld [vmem:[#allocation2 + $0x310] sm:$0xf]
    %v827 = vld [vmem:[#allocation2 + $0x314] sm:$0xf]
    %v828 = vld [vmem:[#allocation2 + $0x318] sm:$0xf]
    %v829 = vld [vmem:[#allocation2 + $0x31c] sm:$0xf]
    %v830 = vld [vmem:[#allocation2 + $0x320] sm:$0xf]
    %v831 = vld [vmem:[#allocation2 + $0x324] sm:$0xf]
    %v832 = vld [vmem:[#allocation2 + $0x328] sm:$0xf]
    %v833 = vld [vmem:[#allocation2 + $0x32c] sm:$0xf]
    %v834 = vld [vmem:[#allocation2 + $0x330] sm:$0xf]
    %v835 = vld [vmem:[#allocation2 + $0x334] sm:$0xf]
    %v836 = vld [vmem:[#allocation2 + $0x338] sm:$0xf]
    %v837 = vld [vmem:[#allocation2 + $0x33c] sm:$0xf]
    %v838 = vld [vmem:[#allocation2 + $0x340] sm:$0xf]
    %v839 = vld [vmem:[#allocation2 + $0x344] sm:$0xf]
    %v840 = vld [vmem:[#allocation2 + $0x348] sm:$0xf]
    %v841 = vld [vmem:[#allocation2 + $0x34c] sm:$0xf]
    %v842 = vld [vmem:[#allocation2 + $0x350] sm:$0xf]
    %v843 = vld [vmem:[#allocation2 + $0x354] sm:$0xf]
    %v844 = vld [vmem:[#allocation2 + $0x358] sm:$0xf]
    %v845 = vld [vmem:[#allocation2 + $0x35c] sm:$0xf]
    %v846 = vld [vmem:[#allocation2 + $0x360] sm:$0xf]
    %v847 = vld [vmem:[#allocation2 + $0x364] sm:$0xf]
    %v848 = vld [vmem:[#allocation2 + $0x368] sm:$0xf]
    %v849 = vld [vmem:[#allocation2 + $0x36c] sm:$0xf]
    %v850 = vld [vmem:[#allocation2 + $0x370] sm:$0xf]
    %v851 = vld [vmem:[#allocation2 + $0x374] sm:$0xf]
    %v852 = vld [vmem:[#allocation2 + $0x378] sm:$0xf]
    %v853 = vld [vmem:[#allocation2 + $0x37c] sm:$0xf]
    %v854 = vld [vmem:[#allocation2 + $0x380] sm:$0xf]
    %v855 = vld [vmem:[#allocation2 + $0x384] sm:$0xf]
    %v856 = vld [vmem:[#allocation2 + $0x388] sm:$0xf]
    %v857 = vld [vmem:[#allocation2 + $0x38c] sm:$0xf]
    %v858 = vld [vmem:[#allocation2 + $0x390] sm:$0xf]
    %v859 = vld [vmem:[#allocation2 + $0x394] sm:$0xf]
    %v860 = vld [vmem:[#allocation2 + $0x398] sm:$0xf]
    %v861 = vld [vmem:[#allocation2 + $0x39c] sm:$0xf]
    %v862 = vld [vmem:[#allocation2 + $0x3a0] sm:$0xf]
    %v863 = vld [vmem:[#allocation2 + $0x3a4] sm:$0xf]
    %v864 = vld [vmem:[#allocation2 + $0x3a8] sm:$0xf]
    %v865 = vld [vmem:[#allocation2 + $0x3ac] sm:$0xf]
    %v866 = vld [vmem:[#allocation2 + $0x3b0] sm:$0xf]
    %v867 = vld [vmem:[#allocation2 + $0x3b4] sm:$0xf]
    %v868 = vld [vmem:[#allocation2 + $0x3b8] sm:$0xf]
    %v869 = vld [vmem:[#allocation2 + $0x3bc] sm:$0xf]
    %v870 = vld [vmem:[#allocation2 + $0x3c0] sm:$0xf]
    %v871 = vld [vmem:[#allocation2 + $0x3c4] sm:$0xf]
    %v872 = vld [vmem:[#allocation2 + $0x3c8] sm:$0xf]
    %v873 = vld [vmem:[#allocation2 + $0x3cc] sm:$0xf]
    %v874 = vld [vmem:[#allocation2 + $0x3d0] sm:$0xf]
    %v875 = vld [vmem:[#allocation2 + $0x3d4] sm:$0xf]
    %v876 = vld [vmem:[#allocation2 + $0x3d8] sm:$0xf]
    %v877 = vld [vmem:[#allocation2 + $0x3dc] sm:$0xf]
    %v878 = vld [vmem:[#allocation2 + $0x3e0] sm:$0xf]
    %v879 = vld [vmem:[#allocation2 + $0x3e4] sm:$0xf]
    %v880 = vld [vmem:[#allocation2 + $0x3e8] sm:$0xf]
    %v881 = vld [vmem:[#allocation2 + $0x3ec] sm:$0xf]
    %v882 = vld [vmem:[#allocation2 + $0x3f0] sm:$0xf]
    %v883 = vld [vmem:[#allocation2 + $0x3f4] sm:$0xf]
    %v884 = vld [vmem:[#allocation2 + $0x3f8] sm:$0xf]
    %v885 = vld [vmem:[#allocation2 + $0x3fc] sm:$0xf]
    %v886 = vld [vmem:[#allocation2 + $0x400] sm:$0xf]
    %v887 = vld [vmem:[#allocation2 + $0x404] sm:$0xf]
    %v888 = vld [vmem:[#allocation2 + $0x408] sm:$0xf]
    %v889 = vld [vmem:[#allocation2 + $0x40c] sm:$0xf]
    %v890 = vld [vmem:[#allocation2 + $0x410] sm:$0xf]
    %v891 = vld [vmem:[#allocation2 + $0x414] sm:$0xf]
    %v892 = vld [vmem:[#allocation2 + $0x418] sm:$0xf]
    %v893 = vld [vmem:[#allocation2 + $0x41c] sm:$0xf]
    %v894 = vld [vmem:[#allocation2 + $0x420] sm:$0xf]
    %v895 = vld [vmem:[#allocation2 + $0x424] sm:$0xf]
    %v896 = vld [vmem:[#allocation2 + $0x428] sm:$0xf]
    %v897 = vld [vmem:[#allocation2 + $0x42c] sm:$0xf]
    %v898 = vld [vmem:[#allocation2 + $0x430] sm:$0xf]
    %v899 = vld [vmem:[#allocation2 + $0x434] sm:$0xf]
    %v900 = vld [vmem:[#allocation2 + $0x438] sm:$0xf]
    %v901 = vld [vmem:[#allocation2 + $0x43c] sm:$0xf]
    %v902 = vld [vmem:[#allocation2 + $0x440] sm:$0xf]
    %v903 = vld [vmem:[#allocation2 + $0x444] sm:$0xf]
    %v904 = vld [vmem:[#allocation2 + $0x448] sm:$0xf]
    %v905 = vld [vmem:[#allocation2 + $0x44c] sm:$0xf]
    %v906 = vld [vmem:[#allocation2 + $0x450] sm:$0xf]
    %v907 = vld [vmem:[#allocation2 + $0x454] sm:$0xf]
    %v908 = vld [vmem:[#allocation2 + $0x458] sm:$0xf]
    %v909 = vld [vmem:[#allocation2 + $0x45c] sm:$0xf]
    %v910 = vld [vmem:[#allocation2 + $0x460] sm:$0xf]
    %v911 = vld [vmem:[#allocation2 + $0x464] sm:$0xf]
    %v912 = vld [vmem:[#allocation2 + $0x468] sm:$0xf]
    %v913 = vld [vmem:[#allocation2 + $0x46c] sm:$0xf]
    %v914 = vld [vmem:[#allocation2 + $0x470] sm:$0xf]
    %v915 = vld [vmem:[#allocation2 + $0x474] sm:$0xf]
    %v916 = vld [vmem:[#allocation2 + $0x478] sm:$0xf]
    %v917 = vld [vmem:[#allocation2 + $0x47c] sm:$0xf]
    %v918 = vld [vmem:[%s2] sm:$0x1]
    %v920 = vlaneseq
    %v921 = vshrl.u32 %v920, 7
    %v922 = vsub.s32 0, %v921
    %v923 = vrot.slane %v918, %v922
    %v925 = vpack.c.b16 %v88, %v86
    %v926 = vpack.c.b16 %v89, %v87
    %v927 = vpack.c.b16 %v554, %v550
    %v928 = vpack.c.b16 %v555, %v551
    %v929 = vpack.c.b16 %v556, %v552
    %v930 = vpack.c.b16 %v557, %v553
    %v931 = vpack.c.b16 %v90, %v88
    %v932 = vpack.c.b16 %v91, %v89
    %v933 = vpack.c.b16 %v558, %v554
    %v934 = vpack.c.b16 %v559, %v555
    %v935 = vpack.c.b16 %v560, %v556
    %v936 = vpack.c.b16 %v561, %v557
    %v937 = vpack.c.b16 %v92, %v90
    %v938 = vpack.c.b16 %v93, %v91
    %v939 = vpack.c.b16 %v562, %v558
    %v940 = vpack.c.b16 %v563, %v559
    %v941 = vpack.c.b16 %v564, %v560
    %v942 = vpack.c.b16 %v565, %v561
    %v943 = vpack.c.b16 %v94, %v92
    %v944 = vpack.c.b16 %v95, %v93
    %v945 = vpack.c.b16 %v566, %v562
    %v946 = vpack.c.b16 %v567, %v563
    %v947 = vpack.c.b16 %v568, %v564
    %v948 = vpack.c.b16 %v569, %v565
    %v949 = vpack.c.b16 %v96, %v94
    %v950 = vpack.c.b16 %v97, %v95
    %v951 = vpack.c.b16 %v570, %v566
    %v952 = vpack.c.b16 %v571, %v567
    %v953 = vpack.c.b16 %v572, %v568
    %v954 = vpack.c.b16 %v573, %v569
    %v955 = vpack.c.b16 %v98, %v96
    %v956 = vpack.c.b16 %v99, %v97
    %v957 = vpack.c.b16 %v574, %v570
    %v958 = vpack.c.b16 %v575, %v571
    %v959 = vpack.c.b16 %v576, %v572
    %v960 = vpack.c.b16 %v577, %v573
    %v961 = vpack.c.b16 %v100, %v98
    %v962 = vpack.c.b16 %v101, %v99
    %v963 = vpack.c.b16 %v578, %v574
    %v964 = vpack.c.b16 %v579, %v575
    %v965 = vpack.c.b16 %v580, %v576
    %v966 = vpack.c.b16 %v581, %v577
    %v967 = vpack.c.b16 %v456, %v100
    %v968 = vpack.c.b16 %v457, %v101
    %v969 = vpack.c.b16 %v582, %v578
    %v970 = vpack.c.b16 %v583, %v579
    %v971 = vpack.c.b16 %v584, %v580
    %v972 = vpack.c.b16 %v585, %v581
    %v973 = vpack.c.b16 %v504, %v456
    %v974 = vpack.c.b16 %v505, %v457
    %v975 = vpack.c.b16 %v586, %v582
    %v976 = vpack.c.b16 %v587, %v583
    %v977 = vpack.c.b16 %v588, %v584
    %v978 = vpack.c.b16 %v589, %v585
    %v979 = vpack.c.b16 %v104, %v102
    %v980 = vpack.c.b16 %v105, %v103
    %v981 = vpack.c.b16 %v594, %v590
    %v982 = vpack.c.b16 %v595, %v591
    %v983 = vpack.c.b16 %v596, %v592
    %v984 = vpack.c.b16 %v597, %v593
    %v985 = vpack.c.b16 %v106, %v104
    %v986 = vpack.c.b16 %v107, %v105
    %v987 = vpack.c.b16 %v598, %v594
    %v988 = vpack.c.b16 %v599, %v595
    %v989 = vpack.c.b16 %v600, %v596
    %v990 = vpack.c.b16 %v601, %v597
    %v991 = vpack.c.b16 %v108, %v106
    %v992 = vpack.c.b16 %v109, %v107
    %v993 = vpack.c.b16 %v602, %v598
    %v994 = vpack.c.b16 %v603, %v599
    %v995 = vpack.c.b16 %v604, %v600
    %v996 = vpack.c.b16 %v605, %v601
    %v997 = vpack.c.b16 %v110, %v108
    %v998 = vpack.c.b16 %v111, %v109
    %v999 = vpack.c.b16 %v606, %v602
    %v1000 = vpack.c.b16 %v607, %v603
    %v1001 = vpack.c.b16 %v608, %v604
    %v1002 = vpack.c.b16 %v609, %v605
    %v1003 = vpack.c.b16 %v112, %v110
    %v1004 = vpack.c.b16 %v113, %v111
    %v1005 = vpack.c.b16 %v610, %v606
    %v1006 = vpack.c.b16 %v611, %v607
    %v1007 = vpack.c.b16 %v612, %v608
    %v1008 = vpack.c.b16 %v613, %v609
    %v1009 = vpack.c.b16 %v114, %v112
    %v1010 = vpack.c.b16 %v115, %v113
    %v1011 = vpack.c.b16 %v614, %v610
    %v1012 = vpack.c.b16 %v615, %v611
    %v1013 = vpack.c.b16 %v616, %v612
    %v1014 = vpack.c.b16 %v617, %v613
    %v1015 = vpack.c.b16 %v116, %v114
    %v1016 = vpack.c.b16 %v117, %v115
    %v1017 = vpack.c.b16 %v618, %v614
    %v1018 = vpack.c.b16 %v619, %v615
    %v1019 = vpack.c.b16 %v620, %v616
    %v1020 = vpack.c.b16 %v621, %v617
    %v1021 = vpack.c.b16 %v458, %v116
    %v1022 = vpack.c.b16 %v459, %v117
    %v1023 = vpack.c.b16 %v622, %v618
    %v1024 = vpack.c.b16 %v623, %v619
    %v1025 = vpack.c.b16 %v624, %v620
    %v1026 = vpack.c.b16 %v625, %v621
    %v1027 = vpack.c.b16 %v506, %v458
    %v1028 = vpack.c.b16 %v507, %v459
    %v1029 = vpack.c.b16 %v626, %v622
    %v1030 = vpack.c.b16 %v627, %v623
    %v1031 = vpack.c.b16 %v628, %v624
    %v1032 = vpack.c.b16 %v629, %v625
    %v1429 = vunpack.c.l.b16 %v630
    %v1430 = vunpack.c.l.b16 %v631
    %v1431 = vunpack.c.l.b16 %v632
    %v1432 = vunpack.c.l.b16 %v633
    %v1433 = vunpack.c.l.b16 %v634
    %v1434 = vunpack.c.l.b16 %v635
    %v1435 = vunpack.c.l.b16 %v636
    %v1436 = vunpack.c.l.b16 %v637
    %v1437 = vunpack.c.l.b16 %v638
    %v1438 = vunpack.c.l.b16 %v639
    %v1439 = vunpack.c.l.b16 %v640
    %v1440 = vunpack.c.l.b16 %v641
    %v1441 = vunpack.c.l.b16 %v642
    %v1442 = vunpack.c.l.b16 %v643
    %v1443 = vunpack.c.l.b16 %v644
    %v1444 = vunpack.c.l.b16 %v645
    %v1445 = vunpack.c.l.b16 %v646
    %v1446 = vunpack.c.l.b16 %v647
    %v1447 = vunpack.c.l.b16 %v648
    %v1448 = vunpack.c.l.b16 %v649
    %v1449 = vunpack.c.l.b16 %v650
    %v1450 = vunpack.c.l.b16 %v651
    %v1451 = vunpack.c.l.b16 %v652
    %v1452 = vunpack.c.l.b16 %v653
    %v1453 = vunpack.c.l.b16 %v654
    %v1454 = vunpack.c.l.b16 %v655
    %v1455 = vunpack.c.l.b16 %v656
    %v1456 = vunpack.c.l.b16 %v657
    %v1457 = vunpack.c.l.b16 %v658
    %v1458 = vunpack.c.l.b16 %v659
    %v1459 = vunpack.c.l.b16 %v660
    %v1460 = vunpack.c.l.b16 %v661
    %v1461 = vunpack.c.l.b16 %v662
    %v1462 = vunpack.c.l.b16 %v663
    %v1463 = vunpack.c.l.b16 %v664
    %v1464 = vunpack.c.l.b16 %v665
    %v1465 = vunpack.c.l.b16 %v666
    %v1466 = vunpack.c.l.b16 %v667
    %v1467 = vunpack.c.l.b16 %v668
    %v1468 = vunpack.c.l.b16 %v669
    %v1469 = vunpack.c.l.b16 %v670
    %v1470 = vunpack.c.l.b16 %v671
    %v1471 = vunpack.c.l.b16 %v672
    %v1472 = vunpack.c.l.b16 %v673
    %v1473 = vunpack.c.l.b16 %v674
    %v1474 = vunpack.c.l.b16 %v675
    %v1475 = vunpack.c.l.b16 %v676
    %v1476 = vunpack.c.l.b16 %v677
    %v1477 = vunpack.c.l.b16 %v678
    %v1478 = vunpack.c.l.b16 %v679
    %v1479 = vunpack.c.l.b16 %v680
    %v1480 = vunpack.c.l.b16 %v681
    %v1481 = vunpack.c.l.b16 %v682
    %v1482 = vunpack.c.l.b16 %v683
    %v1483 = vunpack.c.l.b16 %v684
    %v1484 = vunpack.c.l.b16 %v685
    %v1485 = vunpack.c.l.b16 %v686
    %v1486 = vunpack.c.l.b16 %v687
    %v1487 = vunpack.c.l.b16 %v688
    %v1488 = vunpack.c.l.b16 %v689
    %v1489 = vunpack.c.l.b16 %v690
    %v1490 = vunpack.c.l.b16 %v691
    %v1491 = vunpack.c.l.b16 %v692
    %v1492 = vunpack.c.l.b16 %v693
    %v1493 = vunpack.c.l.b16 %v694
    %v1494 = vunpack.c.l.b16 %v695
    %v1495 = vunpack.c.l.b16 %v696
    %v1496 = vunpack.c.l.b16 %v697
    %v1497 = vunpack.c.l.b16 %v698
    %v1498 = vunpack.c.l.b16 %v699
    %v1499 = vunpack.c.l.b16 %v700
    %v1500 = vunpack.c.l.b16 %v701
    %v1501 = vunpack.c.l.b16 %v702
    %v1502 = vunpack.c.l.b16 %v703
    %v1503 = vunpack.c.l.b16 %v704
    %v1504 = vunpack.c.l.b16 %v705
    %v1505 = vunpack.c.l.b16 %v706
    %v1506 = vunpack.c.l.b16 %v707
    %v1507 = vunpack.c.l.b16 %v708
    %v1508 = vunpack.c.l.b16 %v709
    %v1509 = vunpack.c.l.b16 %v710
    %v1510 = vunpack.c.l.b16 %v711
    %v1511 = vunpack.c.l.b16 %v712
    %v1512 = vunpack.c.l.b16 %v713
    %v1513 = vunpack.c.l.b16 %v714
    %v1514 = vunpack.c.l.b16 %v715
    %v1515 = vunpack.c.l.b16 %v716
    %v1516 = vunpack.c.l.b16 %v717
    %v1517 = vunpack.c.l.b16 %v718
    %v1518 = vunpack.c.l.b16 %v719
    %v1519 = vunpack.c.l.b16 %v720
    %v1520 = vunpack.c.l.b16 %v721
    %v1521 = vunpack.c.l.b16 %v722
    %v1522 = vunpack.c.l.b16 %v723
    %v1523 = vunpack.c.l.b16 %v724
    %v1524 = vunpack.c.l.b16 %v725
    %v1525 = vunpack.c.l.b16 %v726
    %v1526 = vunpack.c.l.b16 %v727
    %v1527 = vunpack.c.l.b16 %v728
    %v1528 = vunpack.c.l.b16 %v729
    %v1529 = vunpack.c.l.b16 %v730
    %v1530 = vunpack.c.l.b16 %v731
    %v1531 = vunpack.c.l.b16 %v732
    %v1532 = vunpack.c.l.b16 %v733
    %v1533 = vunpack.c.l.b16 %v734
    %v1534 = vunpack.c.l.b16 %v735
    %v1535 = vunpack.c.l.b16 %v736
    %v1536 = vunpack.c.l.b16 %v737
    %v1537 = vunpack.c.l.b16 %v738
    %v1538 = vunpack.c.l.b16 %v739
    %v1539 = vunpack.c.l.b16 %v740
    %v1540 = vunpack.c.l.b16 %v741
    %v1541 = vunpack.c.l.b16 %v742
    %v1542 = vunpack.c.l.b16 %v743
    %v1543 = vunpack.c.l.b16 %v744
    %v1544 = vunpack.c.l.b16 %v745
    %v1545 = vunpack.c.l.b16 %v746
    %v1546 = vunpack.c.l.b16 %v747
    %v1547 = vunpack.c.l.b16 %v748
    %v1548 = vunpack.c.l.b16 %v749
    %v1549 = vunpack.c.l.b16 %v750
    %v1550 = vunpack.c.l.b16 %v751
    %v1551 = vunpack.c.l.b16 %v752
    %v1552 = vunpack.c.l.b16 %v753
    %v1553 = vunpack.c.l.b16 %v754
    %v1554 = vunpack.c.l.b16 %v755
    %v1555 = vunpack.c.l.b16 %v756
    %v1556 = vunpack.c.l.b16 %v757
    %v1557 = vunpack.c.l.b16 %v758
    %v1558 = vunpack.c.l.b16 %v759
    %v1559 = vunpack.c.l.b16 %v760
    %v1560 = vunpack.c.l.b16 %v761
    %v1561 = vunpack.c.l.b16 %v762
    %v1562 = vunpack.c.l.b16 %v763
    %v1563 = vunpack.c.l.b16 %v764
    %v1564 = vunpack.c.l.b16 %v765
    %v1565 = vunpack.c.l.b16 %v766
    %v1566 = vunpack.c.l.b16 %v767
    %v1567 = vunpack.c.l.b16 %v768
    %v1568 = vunpack.c.l.b16 %v769
    %v1569 = vunpack.c.l.b16 %v770
    %v1570 = vunpack.c.l.b16 %v771
    %v1571 = vunpack.c.l.b16 %v772
    %v1572 = vunpack.c.l.b16 %v773
    %v1573 = vunpack.c.l.b16 %v774
    %v1574 = vunpack.c.l.b16 %v775
    %v1575 = vunpack.c.l.b16 %v776
    %v1576 = vunpack.c.l.b16 %v777
    %v1577 = vunpack.c.l.b16 %v778
    %v1578 = vunpack.c.l.b16 %v779
    %v1579 = vunpack.c.l.b16 %v780
    %v1580 = vunpack.c.l.b16 %v781
    %v1581 = vunpack.c.l.b16 %v782
    %v1582 = vunpack.c.l.b16 %v783
    %v1583 = vunpack.c.l.b16 %v784
    %v1584 = vunpack.c.l.b16 %v785
    %v1585 = vunpack.c.l.b16 %v786
    %v1586 = vunpack.c.l.b16 %v787
    %v1587 = vunpack.c.l.b16 %v788
    %v1588 = vunpack.c.l.b16 %v789
    %v1589 = vunpack.c.l.b16 %v790
    %v1590 = vunpack.c.l.b16 %v791
    %v1591 = vunpack.c.l.b16 %v792
    %v1592 = vunpack.c.l.b16 %v793
    %v1593 = vunpack.c.l.b16 %v794
    %v1594 = vunpack.c.l.b16 %v795
    %v1595 = vunpack.c.l.b16 %v796
    %v1596 = vunpack.c.l.b16 %v797
    %v1597 = vunpack.c.l.b16 %v798
    %v1598 = vunpack.c.l.b16 %v799
    %v1599 = vunpack.c.l.b16 %v800
    %v1600 = vunpack.c.l.b16 %v801
    %v1601 = vunpack.c.l.b16 %v802
    %v1602 = vunpack.c.l.b16 %v803
    %v1603 = vunpack.c.l.b16 %v804
    %v1604 = vunpack.c.l.b16 %v805
    %v1605 = vunpack.c.l.b16 %v806
    %v1606 = vunpack.c.l.b16 %v807
    %v1607 = vunpack.c.l.b16 %v808
    %v1608 = vunpack.c.l.b16 %v809
    %v1609 = vunpack.c.l.b16 %v810
    %v1610 = vunpack.c.l.b16 %v811
    %v1611 = vunpack.c.l.b16 %v812
    %v1612 = vunpack.c.l.b16 %v813
    %v1613 = vunpack.c.l.b16 %v814
    %v1614 = vunpack.c.l.b16 %v815
    %v1615 = vunpack.c.l.b16 %v816
    %v1616 = vunpack.c.l.b16 %v817
    %v1617 = vunpack.c.l.b16 %v818
    %v1618 = vunpack.c.l.b16 %v819
    %v1619 = vunpack.c.l.b16 %v820
    %v1620 = vunpack.c.l.b16 %v821
    %v1621 = vunpack.c.l.b16 %v822
    %v1622 = vunpack.c.l.b16 %v823
    %v1623 = vunpack.c.l.b16 %v824
    %v1624 = vunpack.c.l.b16 %v825
    %v1625 = vunpack.c.l.b16 %v826
    %v1626 = vunpack.c.l.b16 %v827
    %v1627 = vunpack.c.l.b16 %v828
    %v1628 = vunpack.c.l.b16 %v829
    %v1629 = vunpack.c.l.b16 %v830
    %v1630 = vunpack.c.l.b16 %v831
    %v1631 = vunpack.c.l.b16 %v832
    %v1632 = vunpack.c.l.b16 %v833
    %v1633 = vunpack.c.l.b16 %v834
    %v1634 = vunpack.c.l.b16 %v835
    %v1635 = vunpack.c.l.b16 %v836
    %v1636 = vunpack.c.l.b16 %v837
    %v1637 = vunpack.c.l.b16 %v838
    %v1638 = vunpack.c.l.b16 %v839
    %v1639 = vunpack.c.l.b16 %v840
    %v1640 = vunpack.c.l.b16 %v841
    %v1641 = vunpack.c.l.b16 %v842
    %v1642 = vunpack.c.l.b16 %v843
    %v1643 = vunpack.c.l.b16 %v844
    %v1644 = vunpack.c.l.b16 %v845
    %v1645 = vunpack.c.l.b16 %v846
    %v1646 = vunpack.c.l.b16 %v847
    %v1647 = vunpack.c.l.b16 %v848
    %v1648 = vunpack.c.l.b16 %v849
    %v1649 = vunpack.c.l.b16 %v850
    %v1650 = vunpack.c.l.b16 %v851
    %v1651 = vunpack.c.l.b16 %v852
    %v1652 = vunpack.c.l.b16 %v853
    %v1653 = vunpack.c.l.b16 %v854
    %v1654 = vunpack.c.l.b16 %v855
    %v1655 = vunpack.c.l.b16 %v856
    %v1656 = vunpack.c.l.b16 %v857
    %v1657 = vunpack.c.l.b16 %v858
    %v1658 = vunpack.c.l.b16 %v859
    %v1659 = vunpack.c.l.b16 %v860
    %v1660 = vunpack.c.l.b16 %v861
    %v1661 = vunpack.c.l.b16 %v862
    %v1662 = vunpack.c.l.b16 %v863
    %v1663 = vunpack.c.l.b16 %v864
    %v1664 = vunpack.c.l.b16 %v865
    %v1665 = vunpack.c.l.b16 %v866
    %v1666 = vunpack.c.l.b16 %v867
    %v1667 = vunpack.c.l.b16 %v868
    %v1668 = vunpack.c.l.b16 %v869
    %v1669 = vunpack.c.l.b16 %v870
    %v1670 = vunpack.c.l.b16 %v871
    %v1671 = vunpack.c.l.b16 %v872
    %v1672 = vunpack.c.l.b16 %v873
    %v1673 = vunpack.c.l.b16 %v874
    %v1674 = vunpack.c.l.b16 %v875
    %v1675 = vunpack.c.l.b16 %v876
    %v1676 = vunpack.c.l.b16 %v877
    %v1677 = vunpack.c.l.b16 %v878
    %v1678 = vunpack.c.l.b16 %v879
    %v1679 = vunpack.c.l.b16 %v880
    %v1680 = vunpack.c.l.b16 %v881
    %v1681 = vunpack.c.l.b16 %v882
    %v1682 = vunpack.c.l.b16 %v883
    %v1683 = vunpack.c.l.b16 %v884
    %v1684 = vunpack.c.l.b16 %v885
    %v1685 = vunpack.c.l.b16 %v886
    %v1686 = vunpack.c.l.b16 %v887
    %v1687 = vunpack.c.l.b16 %v888
    %v1688 = vunpack.c.l.b16 %v889
    %v1689 = vunpack.c.l.b16 %v890
    %v1690 = vunpack.c.l.b16 %v891
    %v1691 = vunpack.c.l.b16 %v892
    %v1692 = vunpack.c.l.b16 %v893
    %v1693 = vunpack.c.l.b16 %v894
    %v1694 = vunpack.c.l.b16 %v895
    %v1695 = vunpack.c.l.b16 %v896
    %v1696 = vunpack.c.l.b16 %v897
    %v1697 = vunpack.c.l.b16 %v898
    %v1698 = vunpack.c.l.b16 %v899
    %v1699 = vunpack.c.l.b16 %v900
    %v1700 = vunpack.c.l.b16 %v901
    %v1701 = vunpack.c.l.b16 %v902
    %v1702 = vunpack.c.l.b16 %v903
    %v1703 = vunpack.c.l.b16 %v904
    %v1704 = vunpack.c.l.b16 %v905
    %v1705 = vunpack.c.l.b16 %v906
    %v1706 = vunpack.c.l.b16 %v907
    %v1707 = vunpack.c.l.b16 %v908
    %v1708 = vunpack.c.l.b16 %v909
    %v1709 = vunpack.c.l.b16 %v910
    %v1710 = vunpack.c.l.b16 %v911
    %v1711 = vunpack.c.l.b16 %v912
    %v1712 = vunpack.c.l.b16 %v913
    %v1713 = vunpack.c.l.b16 %v914
    %v1714 = vunpack.c.l.b16 %v915
    %v1715 = vunpack.c.l.b16 %v916
    %v1716 = vunpack.c.l.b16 %v917
    %v1717 = vpack.c.b16 %v1430, %v1429
    %v1718 = vpack.c.b16 %v1432, %v1431
    %v1719 = vpack.c.b16 %v1434, %v1433
    %v1720 = vpack.c.b16 %v1436, %v1435
    %v1721 = vpack.c.b16 %v1438, %v1437
    %v1722 = vpack.c.b16 %v1440, %v1439
    %v1723 = vpack.c.b16 %v1442, %v1441
    %v1724 = vpack.c.b16 %v1444, %v1443
    %v1725 = vpack.c.b16 %v1446, %v1445
    %v1726 = vpack.c.b16 %v1448, %v1447
    %v1727 = vpack.c.b16 %v1450, %v1449
    %v1728 = vpack.c.b16 %v1452, %v1451
    %v1729 = vpack.c.b16 %v1454, %v1453
    %v1730 = vpack.c.b16 %v1456, %v1455
    %v1731 = vpack.c.b16 %v1458, %v1457
    %v1732 = vpack.c.b16 %v1460, %v1459
    %v1733 = vpack.c.b16 %v1462, %v1461
    %v1734 = vpack.c.b16 %v1464, %v1463
    %v1735 = vpack.c.b16 %v1466, %v1465
    %v1736 = vpack.c.b16 %v1468, %v1467
    %v1737 = vpack.c.b16 %v1470, %v1469
    %v1738 = vpack.c.b16 %v1472, %v1471
    %v1739 = vpack.c.b16 %v1474, %v1473
    %v1740 = vpack.c.b16 %v1476, %v1475
    %v1741 = vpack.c.b16 %v1478, %v1477
    %v1742 = vpack.c.b16 %v1480, %v1479
    %v1743 = vpack.c.b16 %v1482, %v1481
    %v1744 = vpack.c.b16 %v1484, %v1483
    %v1745 = vpack.c.b16 %v1486, %v1485
    %v1746 = vpack.c.b16 %v1488, %v1487
    %v1747 = vpack.c.b16 %v1490, %v1489
    %v1748 = vpack.c.b16 %v1492, %v1491
    %v1749 = vpack.c.b16 %v1494, %v1493
    %v1750 = vpack.c.b16 %v1496, %v1495
    %v1751 = vpack.c.b16 %v1498, %v1497
    %v1752 = vpack.c.b16 %v1500, %v1499
    %v1753 = vpack.c.b16 %v1502, %v1501
    %v1754 = vpack.c.b16 %v1504, %v1503
    %v1755 = vpack.c.b16 %v1506, %v1505
    %v1756 = vpack.c.b16 %v1508, %v1507
    %v1757 = vpack.c.b16 %v1510, %v1509
    %v1758 = vpack.c.b16 %v1512, %v1511
    %v1759 = vpack.c.b16 %v1514, %v1513
    %v1760 = vpack.c.b16 %v1516, %v1515
    %v1761 = vpack.c.b16 %v1518, %v1517
    %v1762 = vpack.c.b16 %v1520, %v1519
    %v1763 = vpack.c.b16 %v1522, %v1521
    %v1764 = vpack.c.b16 %v1524, %v1523
    %v1765 = vpack.c.b16 %v1526, %v1525
    %v1766 = vpack.c.b16 %v1528, %v1527
    %v1767 = vpack.c.b16 %v1530, %v1529
    %v1768 = vpack.c.b16 %v1532, %v1531
    %v1769 = vpack.c.b16 %v1534, %v1533
    %v1770 = vpack.c.b16 %v1536, %v1535
    %v1771 = vpack.c.b16 %v1538, %v1537
    %v1772 = vpack.c.b16 %v1540, %v1539
    %v1773 = vpack.c.b16 %v1542, %v1541
    %v1774 = vpack.c.b16 %v1544, %v1543
    %v1775 = vpack.c.b16 %v1546, %v1545
    %v1776 = vpack.c.b16 %v1548, %v1547
    %v1777 = vpack.c.b16 %v1550, %v1549
    %v1778 = vpack.c.b16 %v1552, %v1551
    %v1779 = vpack.c.b16 %v1554, %v1553
    %v1780 = vpack.c.b16 %v1556, %v1555
    %v1781 = vpack.c.b16 %v1558, %v1557
    %v1782 = vpack.c.b16 %v1560, %v1559
    %v1783 = vpack.c.b16 %v1562, %v1561
    %v1784 = vpack.c.b16 %v1564, %v1563
    %v1785 = vpack.c.b16 %v1566, %v1565
    %v1786 = vpack.c.b16 %v1568, %v1567
    %v1787 = vpack.c.b16 %v1570, %v1569
    %v1788 = vpack.c.b16 %v1572, %v1571
    %v1789 = vpack.c.b16 %v1574, %v1573
    %v1790 = vpack.c.b16 %v1576, %v1575
    %v1791 = vpack.c.b16 %v1578, %v1577
    %v1792 = vpack.c.b16 %v1580, %v1579
    %v1793 = vpack.c.b16 %v1582, %v1581
    %v1794 = vpack.c.b16 %v1584, %v1583
    %v1795 = vpack.c.b16 %v1586, %v1585
    %v1796 = vpack.c.b16 %v1588, %v1587
    %v1797 = vpack.c.b16 %v1590, %v1589
    %v1798 = vpack.c.b16 %v1592, %v1591
    %v1799 = vpack.c.b16 %v1594, %v1593
    %v1800 = vpack.c.b16 %v1596, %v1595
    %v1801 = vpack.c.b16 %v1598, %v1597
    %v1802 = vpack.c.b16 %v1600, %v1599
    %v1803 = vpack.c.b16 %v1602, %v1601
    %v1804 = vpack.c.b16 %v1604, %v1603
    %v1805 = vpack.c.b16 %v1606, %v1605
    %v1806 = vpack.c.b16 %v1608, %v1607
    %v1807 = vpack.c.b16 %v1610, %v1609
    %v1808 = vpack.c.b16 %v1612, %v1611
    %v1809 = vpack.c.b16 %v1614, %v1613
    %v1810 = vpack.c.b16 %v1616, %v1615
    %v1811 = vpack.c.b16 %v1618, %v1617
    %v1812 = vpack.c.b16 %v1620, %v1619
    %v1813 = vpack.c.b16 %v1622, %v1621
    %v1814 = vpack.c.b16 %v1624, %v1623
    %v1815 = vpack.c.b16 %v1626, %v1625
    %v1816 = vpack.c.b16 %v1628, %v1627
    %v1817 = vpack.c.b16 %v1630, %v1629
    %v1818 = vpack.c.b16 %v1632, %v1631
    %v1819 = vpack.c.b16 %v1634, %v1633
    %v1820 = vpack.c.b16 %v1636, %v1635
    %v1821 = vpack.c.b16 %v1638, %v1637
    %v1822 = vpack.c.b16 %v1640, %v1639
    %v1823 = vpack.c.b16 %v1642, %v1641
    %v1824 = vpack.c.b16 %v1644, %v1643
    %v1825 = vpack.c.b16 %v1646, %v1645
    %v1826 = vpack.c.b16 %v1648, %v1647
    %v1827 = vpack.c.b16 %v1650, %v1649
    %v1828 = vpack.c.b16 %v1652, %v1651
    %v1829 = vpack.c.b16 %v1654, %v1653
    %v1830 = vpack.c.b16 %v1656, %v1655
    %v1831 = vpack.c.b16 %v1658, %v1657
    %v1832 = vpack.c.b16 %v1660, %v1659
    %v1833 = vpack.c.b16 %v1662, %v1661
    %v1834 = vpack.c.b16 %v1664, %v1663
    %v1835 = vpack.c.b16 %v1666, %v1665
    %v1836 = vpack.c.b16 %v1668, %v1667
    %v1837 = vpack.c.b16 %v1670, %v1669
    %v1838 = vpack.c.b16 %v1672, %v1671
    %v1839 = vpack.c.b16 %v1674, %v1673
    %v1840 = vpack.c.b16 %v1676, %v1675
    %v1841 = vpack.c.b16 %v1678, %v1677
    %v1842 = vpack.c.b16 %v1680, %v1679
    %v1843 = vpack.c.b16 %v1682, %v1681
    %v1844 = vpack.c.b16 %v1684, %v1683
    %v1845 = vpack.c.b16 %v1686, %v1685
    %v1846 = vpack.c.b16 %v1688, %v1687
    %v1847 = vpack.c.b16 %v1690, %v1689
    %v1848 = vpack.c.b16 %v1692, %v1691
    %v1849 = vpack.c.b16 %v1694, %v1693
    %v1850 = vpack.c.b16 %v1696, %v1695
    %v1851 = vpack.c.b16 %v1698, %v1697
    %v1852 = vpack.c.b16 %v1700, %v1699
    %v1853 = vpack.c.b16 %v1702, %v1701
    %v1854 = vpack.c.b16 %v1704, %v1703
    %v1855 = vpack.c.b16 %v1706, %v1705
    %v1856 = vpack.c.b16 %v1708, %v1707
    %v1857 = vpack.c.b16 %v1710, %v1709
    %v1858 = vpack.c.b16 %v1712, %v1711
    %v1859 = vpack.c.b16 %v1714, %v1713
    %v1860 = vpack.c.b16 %v1716, %v1715
    %2005 = vmatprep.subr.bf16.mxu0 0
    %2006 = vmatpush1.bf16.msra.mxu0 %v1717
    %2007 = vmatprep.subr.bf16.mxu0 0
    %2008 = vmatpush1.bf16.msra.mxu0 %v1718
    %2009 = vmatprep.subr.bf16.mxu0 0
    %2010 = vmatpush1.bf16.msra.mxu0 %v1719
    %2011 = vmatprep.subr.bf16.mxu0 0
    %2012 = vmatpush1.bf16.msra.mxu0 %v1720
    %2013 = vmatprep.subr.bf16.mxu0 0
    %2014 = vmatpush1.bf16.msra.mxu0 %v1721
    %2015 = vmatprep.subr.bf16.mxu0 0
    %2016 = vmatpush1.bf16.msra.mxu0 %v1722
    %2017 = vmatprep.subr.bf16.mxu0 0
    %2018 = vmatpush1.bf16.msra.mxu0 %v1723
    %2019 = vmatprep.subr.bf16.mxu0 0
    %2020 = vmatpush1.bf16.msra.mxu0 %v1724
    %2021 = vmatprep.subr.bf16.mxu0 0
    %2022 = vmatpush1.bf16.msra.mxu0 %v1725
    %2023 = vmatprep.subr.bf16.mxu0 0
    %2024 = vmatpush1.bf16.msra.mxu0 %v1726
    %2025 = vmatprep.subr.bf16.mxu0 0
    %2026 = vmatpush1.bf16.msra.mxu0 %v1727
    %2027 = vmatprep.subr.bf16.mxu0 0
    %2028 = vmatpush1.bf16.msra.mxu0 %v1728
    %2029 = vmatprep.subr.bf16.mxu0 0
    %2030 = vmatpush1.bf16.msra.mxu0 %v1729
    %2031 = vmatprep.subr.bf16.mxu0 0
    %2032 = vmatpush1.bf16.msra.mxu0 %v1730
    %2033 = vmatprep.subr.bf16.mxu0 0
    %2034 = vmatpush1.bf16.msra.mxu0 %v1731
    %2035 = vmatprep.subr.bf16.mxu0 0
    %2036 = vmatpush1.bf16.msra.mxu0 %v1732
    %2037 = vmatprep.mubr.bf16.mxu0 %v926
    %2038 = vmatmul.mubr.bf16.gmra.mrb[0].mxu0 %v925
    %v2039 = vpop.f32.mrb[0].mxu0
    %v2040 = vadd.f32 %v923, %v2039
    %v2041 = vpop.f32.mrb[0].mxu0
    %v2042 = vpop.f32.mrb[0].mxu0
    %v2043 = vadd.f32 %v923, %v2042
    %v2044 = vpop.f32.mrb[0].mxu0
    %2045 = vmatprep.mubr.bf16.mxu0 %v938
    %2046 = vmatmul.mubr.bf16.gmra.mrb[0].mxu0 %v937
    %v2047 = vpop.f32.mrb[0].mxu0
    %v2048 = vadd.f32 %v923, %v2047
    %v2049 = vpop.f32.mrb[0].mxu0
    %v2050 = vpop.f32.mrb[0].mxu0
    %v2051 = vadd.f32 %v923, %v2050
    %v2052 = vpop.f32.mrb[0].mxu0
    %2053 = vmatprep.mubr.bf16.mxu0 %v950
    %2054 = vmatmul.mubr.bf16.gmra.mrb[0].mxu0 %v949
    %v2055 = vpop.f32.mrb[0].mxu0
    %v2056 = vadd.f32 %v923, %v2055
    %v2057 = vpop.f32.mrb[0].mxu0
    %v2058 = vpop.f32.mrb[0].mxu0
    %v2059 = vadd.f32 %v923, %v2058
    %v2060 = vpop.f32.mrb[0].mxu0
    %2061 = vmatprep.mubr.bf16.mxu0 %v962
    %2062 = vmatmul.mubr.bf16.gmra.mrb[0].mxu0 %v961
    %v2063 = vpop.f32.mrb[0].mxu0
    %v2064 = vadd.f32 %v923, %v2063
    %v2065 = vpop.f32.mrb[0].mxu0
    %v2066 = vpop.f32.mrb[0].mxu0
    %v2067 = vadd.f32 %v923, %v2066
    %v2068 = vpop.f32.mrb[0].mxu0
    %2069 = vmatprep.mubr.bf16.mxu0 %v980
    %2070 = vmatmul.mubr.bf16.gmra.mrb[0].mxu0 %v979
    %v2071 = vpop.f32.mrb[0].mxu0
    %v2072 = vadd.f32 %v923, %v2071
    %v2073 = vpop.f32.mrb[0].mxu0
    %v2074 = vpop.f32.mrb[0].mxu0
    %v2075 = vadd.f32 %v923, %v2074
    %v2076 = vpop.f32.mrb[0].mxu0
    %2077 = vmatprep.mubr.bf16.mxu0 %v992
    %2078 = vmatmul.mubr.bf16.gmra.mrb[0].mxu0 %v991
    %v2079 = vpop.f32.mrb[0].mxu0
    %v2080 = vadd.f32 %v923, %v2079
    %v2081 = vpop.f32.mrb[0].mxu0
    %v2082 = vpop.f32.mrb[0].mxu0
    %v2083 = vadd.f32 %v923, %v2082
    %v2084 = vpop.f32.mrb[0].mxu0
    %2085 = vmatprep.mubr.bf16.mxu0 %v1004
    %2086 = vmatmul.mubr.bf16.gmra.mrb[0].mxu0 %v1003
    %v2087 = vpop.f32.mrb[0].mxu0
    %v2088 = vadd.f32 %v923, %v2087
    %v2089 = vpop.f32.mrb[0].mxu0
    %v2090 = vpop.f32.mrb[0].mxu0
    %v2091 = vadd.f32 %v923, %v2090
    %v2092 = vpop.f32.mrb[0].mxu0
    %2093 = vmatprep.mubr.bf16.mxu0 %v1016
    %2094 = vmatmul.mubr.bf16.gmra.mrb[0].mxu0 %v1015
    %v2095 = vpop.f32.mrb[0].mxu0
    %v2096 = vadd.f32 %v923, %v2095
    %v2097 = vpop.f32.mrb[0].mxu0
    %v2098 = vpop.f32.mrb[0].mxu0
    %v2099 = vadd.f32 %v923, %v2098
    %v2100 = vpop.f32.mrb[0].mxu0
    %2101 = vdwg.mxu0
    %2102 = vmatprep.subr.bf16.mxu0 0
    %2103 = vmatpush1.bf16.msra.mxu0 %v1733
    %2104 = vmatprep.subr.bf16.mxu0 0
    %2105 = vmatpush1.bf16.msra.mxu0 %v1734
    %2106 = vmatprep.subr.bf16.mxu0 0
    %2107 = vmatpush1.bf16.msra.mxu0 %v1735
    %2108 = vmatprep.subr.bf16.mxu0 0
    %2109 = vmatpush1.bf16.msra.mxu0 %v1736
    %2110 = vmatprep.subr.bf16.mxu0 0
    %2111 = vmatpush1.bf16.msra.mxu0 %v1737
    %2112 = vmatprep.subr.bf16.mxu0 0
    %2113 = vmatpush1.bf16.msra.mxu0 %v1738
    %2114 = vmatprep.subr.bf16.mxu0 0
    %2115 = vmatpush1.bf16.msra.mxu0 %v1739
    %2116 = vmatprep.subr.bf16.mxu0 0
    %2117 = vmatpush1.bf16.msra.mxu0 %v1740
    %2118 = vmatprep.subr.bf16.mxu0 0
    %2119 = vmatpush1.bf16.msra.mxu0 %v1741
    %2120 = vmatprep.subr.bf16.mxu0 0
    %2121 = vmatpush1.bf16.msra.mxu0 %v1742
    %2122 = vmatprep.subr.bf16.mxu0 0
    %2123 = vmatpush1.bf16.msra.mxu0 %v1743
    %2124 = vmatprep.subr.bf16.mxu0 0
    %2125 = vmatpush1.bf16.msra.mxu0 %v1744
    %2126 = vmatprep.subr.bf16.mxu0 0
    %2127 = vmatpush1.bf16.msra.mxu0 %v1745
    %2128 = vmatprep.subr.bf16.mxu0 0
    %2129 = vmatpush1.bf16.msra.mxu0 %v1746
    %2130 = vmatprep.subr.bf16.mxu0 0
    %2131 = vmatpush1.bf16.msra.mxu0 %v1747
    %2132 = vmatprep.subr.bf16.mxu0 0
    %2133 = vmatpush1.bf16.msra.mxu0 %v1748
    %2134 = vmatprep.mubr.bf16.mxu0 %v928
    %2135 = vmatmul.mubr.bf16.gmra.mrb[0].mxu0 %v927
    %v2136 = vpop.f32.mrb[0].mxu0
    %v2137 = vadd.f32 %v2040, %v2136
    %v2138 = vpop.f32.mrb[0].mxu0
    %v2139 = vpop.f32.mrb[0].mxu0
    %v2140 = vadd.f32 %v2043, %v2139
    %v2141 = vpop.f32.mrb[0].mxu0
    %2142 = vmatprep.mubr.bf16.mxu0 %v940
    %2143 = vmatmul.mubr.bf16.gmra.mrb[0].mxu0 %v939
    %v2144 = vpop.f32.mrb[0].mxu0
    %v2145 = vadd.f32 %v2048, %v2144
    %v2146 = vpop.f32.mrb[0].mxu0
    %v2147 = vpop.f32.mrb[0].mxu0
    %v2148 = vadd.f32 %v2051, %v2147
    %v2149 = vpop.f32.mrb[0].mxu0
    %2150 = vmatprep.mubr.bf16.mxu0 %v952
    %2151 = vmatmul.mubr.bf16.gmra.mrb[0].mxu0 %v951
    %v2152 = vpop.f32.mrb[0].mxu0
    %v2153 = vadd.f32 %v2056, %v2152
    %v2154 = vpop.f32.mrb[0].mxu0
    %v2155 = vpop.f32.mrb[0].mxu0
    %v2156 = vadd.f32 %v2059, %v2155
    %v2157 = vpop.f32.mrb[0].mxu0
    %2158 = vmatprep.mubr.bf16.mxu0 %v964
    %2159 = vmatmul.mubr.bf16.gmra.mrb[0].mxu0 %v963
    %v2160 = vpop.f32.mrb[0].mxu0
    %v2161 = vadd.f32 %v2064, %v2160
    %v2162 = vpop.f32.mrb[0].mxu0
    %v2163 = vpop.f32.mrb[0].mxu0
    %v2164 = vadd.f32 %v2067, %v2163
    %v2165 = vpop.f32.mrb[0].mxu0
    %2166 = vmatprep.mubr.bf16.mxu0 %v982
    %2167 = vmatmul.mubr.bf16.gmra.mrb[0].mxu0 %v981
    %v2168 = vpop.f32.mrb[0].mxu0
    %v2169 = vadd.f32 %v2072, %v2168
    %v2170 = vpop.f32.mrb[0].mxu0
    %v2171 = vpop.f32.mrb[0].mxu0
    %v2172 = vadd.f32 %v2075, %v2171
    %v2173 = vpop.f32.mrb[0].mxu0
    %2174 = vmatprep.mubr.bf16.mxu0 %v994
    %2175 = vmatmul.mubr.bf16.gmra.mrb[0].mxu0 %v993
    %v2176 = vpop.f32.mrb[0].mxu0
    %v2177 = vadd.f32 %v2080, %v2176
    %v2178 = vpop.f32.mrb[0].mxu0
    %v2179 = vpop.f32.mrb[0].mxu0
    %v2180 = vadd.f32 %v2083, %v2179
    %v2181 = vpop.f32.mrb[0].mxu0
    %2182 = vmatprep.mubr.bf16.mxu0 %v1006
    %2183 = vmatmul.mubr.bf16.gmra.mrb[0].mxu0 %v1005
    %v2184 = vpop.f32.mrb[0].mxu0
    %v2185 = vadd.f32 %v2088, %v2184
    %v2186 = vpop.f32.mrb[0].mxu0
    %v2187 = vpop.f32.mrb[0].mxu0
    %v2188 = vadd.f32 %v2091, %v2187
    %v2189 = vpop.f32.mrb[0].mxu0
    %2190 = vmatprep.mubr.bf16.mxu0 %v1018
    %2191 = vmatmul.mubr.bf16.gmra.mrb[0].mxu0 %v1017
    %v2192 = vpop.f32.mrb[0].mxu0
    %v2193 = vadd.f32 %v2096, %v2192
    %v2194 = vpop.f32.mrb[0].mxu0
    %v2195 = vpop.f32.mrb[0].mxu0
    %v2196 = vadd.f32 %v2099, %v2195
    %v2197 = vpop.f32.mrb[0].mxu0
    %2198 = vdwg.mxu0
    %2199 = vmatprep.subr.bf16.mxu0 0
    %2200 = vmatpush1.bf16.msra.mxu0 %v1749
    %2201 = vmatprep.subr.bf16.mxu0 0
    %2202 = vmatpush1.bf16.msra.mxu0 %v1750
    %2203 = vmatprep.subr.bf16.mxu0 0
    %2204 = vmatpush1.bf16.msra.mxu0 %v1751
    %2205 = vmatprep.subr.bf16.mxu0 0
    %2206 = vmatpush1.bf16.msra.mxu0 %v1752
    %2207 = vmatprep.subr.bf16.mxu0 0
    %2208 = vmatpush1.bf16.msra.mxu0 %v1753
    %2209 = vmatprep.subr.bf16.mxu0 0
    %2210 = vmatpush1.bf16.msra.mxu0 %v1754
    %2211 = vmatprep.subr.bf16.mxu0 0
    %2212 = vmatpush1.bf16.msra.mxu0 %v1755
    %2213 = vmatprep.subr.bf16.mxu0 0
    %2214 = vmatpush1.bf16.msra.mxu0 %v1756
    %2215 = vmatprep.subr.bf16.mxu0 0
    %2216 = vmatpush1.bf16.msra.mxu0 %v1757
    %2217 = vmatprep.subr.bf16.mxu0 0
    %2218 = vmatpush1.bf16.msra.mxu0 %v1758
    %2219 = vmatprep.subr.bf16.mxu0 0
    %2220 = vmatpush1.bf16.msra.mxu0 %v1759
    %2221 = vmatprep.subr.bf16.mxu0 0
    %2222 = vmatpush1.bf16.msra.mxu0 %v1760
    %2223 = vmatprep.subr.bf16.mxu0 0
    %2224 = vmatpush1.bf16.msra.mxu0 %v1761
    %2225 = vmatprep.subr.bf16.mxu0 0
    %2226 = vmatpush1.bf16.msra.mxu0 %v1762
    %2227 = vmatprep.subr.bf16.mxu0 0
    %2228 = vmatpush1.bf16.msra.mxu0 %v1763
    %2229 = vmatprep.subr.bf16.mxu0 0
    %2230 = vmatpush1.bf16.msra.mxu0 %v1764
    %2231 = vmatprep.mubr.bf16.mxu0 %v930
    %2232 = vmatmul.mubr.bf16.gmra.mrb[0].mxu0 %v929
    %v2233 = vpop.f32.mrb[0].mxu0
    %v2234 = vadd.f32 %v2137, %v2233
    %v2235 = vpop.f32.mrb[0].mxu0
    %v2236 = vpop.f32.mrb[0].mxu0
    %v2237 = vadd.f32 %v2140, %v2236
    %v2238 = vpop.f32.mrb[0].mxu0
    %2239 = vmatprep.mubr.bf16.mxu0 %v942
    %2240 = vmatmul.mubr.bf16.gmra.mrb[0].mxu0 %v941
    %v2241 = vpop.f32.mrb[0].mxu0
    %v2242 = vadd.f32 %v2145, %v2241
    %v2243 = vpop.f32.mrb[0].mxu0
    %v2244 = vpop.f32.mrb[0].mxu0
    %v2245 = vadd.f32 %v2148, %v2244
    %v2246 = vpop.f32.mrb[0].mxu0
    %2247 = vmatprep.mubr.bf16.mxu0 %v954
    %2248 = vmatmul.mubr.bf16.gmra.mrb[0].mxu0 %v953
    %v2249 = vpop.f32.mrb[0].mxu0
    %v2250 = vadd.f32 %v2153, %v2249
    %v2251 = vpop.f32.mrb[0].mxu0
    %v2252 = vpop.f32.mrb[0].mxu0
    %v2253 = vadd.f32 %v2156, %v2252
    %v2254 = vpop.f32.mrb[0].mxu0
    %2255 = vmatprep.mubr.bf16.mxu0 %v966
    %2256 = vmatmul.mubr.bf16.gmra.mrb[0].mxu0 %v965
    %v2257 = vpop.f32.mrb[0].mxu0
    %v2258 = vadd.f32 %v2161, %v2257
    %v2259 = vpop.f32.mrb[0].mxu0
    %v2260 = vpop.f32.mrb[0].mxu0
    %v2261 = vadd.f32 %v2164, %v2260
    %v2262 = vpop.f32.mrb[0].mxu0
    %2263 = vmatprep.mubr.bf16.mxu0 %v984
    %2264 = vmatmul.mubr.bf16.gmra.mrb[0].mxu0 %v983
    %v2265 = vpop.f32.mrb[0].mxu0
    %v2266 = vadd.f32 %v2169, %v2265
    %v2267 = vpop.f32.mrb[0].mxu0
    %v2268 = vpop.f32.mrb[0].mxu0
    %v2269 = vadd.f32 %v2172, %v2268
    %v2270 = vpop.f32.mrb[0].mxu0
    %2271 = vmatprep.mubr.bf16.mxu0 %v996
    %2272 = vmatmul.mubr.bf16.gmra.mrb[0].mxu0 %v995
    %v2273 = vpop.f32.mrb[0].mxu0
    %v2274 = vadd.f32 %v2177, %v2273
    %v2275 = vpop.f32.mrb[0].mxu0
    %v2276 = vpop.f32.mrb[0].mxu0
    %v2277 = vadd.f32 %v2180, %v2276
    %v2278 = vpop.f32.mrb[0].mxu0
    %2279 = vmatprep.mubr.bf16.mxu0 %v1008
    %2280 = vmatmul.mubr.bf16.gmra.mrb[0].mxu0 %v1007
    %v2281 = vpop.f32.mrb[0].mxu0
    %v2282 = vadd.f32 %v2185, %v2281
    %v2283 = vpop.f32.mrb[0].mxu0
    %v2284 = vpop.f32.mrb[0].mxu0
    %v2285 = vadd.f32 %v2188, %v2284
    %v2286 = vpop.f32.mrb[0].mxu0
    %2287 = vmatprep.mubr.bf16.mxu0 %v1020
    %2288 = vmatmul.mubr.bf16.gmra.mrb[0].mxu0 %v1019
    %v2289 = vpop.f32.mrb[0].mxu0
    %v2290 = vadd.f32 %v2193, %v2289
    %v2291 = vpop.f32.mrb[0].mxu0
    %v2292 = vpop.f32.mrb[0].mxu0
    %v2293 = vadd.f32 %v2196, %v2292
    %v2294 = vpop.f32.mrb[0].mxu0
    %2295 = vdwg.mxu0
    %2296 = vmatprep.subr.bf16.mxu0 0
    %2297 = vmatpush1.bf16.msra.mxu0 %v1765
    %2298 = vmatprep.subr.bf16.mxu0 0
    %2299 = vmatpush1.bf16.msra.mxu0 %v1766
    %2300 = vmatprep.subr.bf16.mxu0 0
    %2301 = vmatpush1.bf16.msra.mxu0 %v1767
    %2302 = vmatprep.subr.bf16.mxu0 0
    %2303 = vmatpush1.bf16.msra.mxu0 %v1768
    %2304 = vmatprep.subr.bf16.mxu0 0
    %2305 = vmatpush1.bf16.msra.mxu0 %v1769
    %2306 = vmatprep.subr.bf16.mxu0 0
    %2307 = vmatpush1.bf16.msra.mxu0 %v1770
    %2308 = vmatprep.subr.bf16.mxu0 0
    %2309 = vmatpush1.bf16.msra.mxu0 %v1771
    %2310 = vmatprep.subr.bf16.mxu0 0
    %2311 = vmatpush1.bf16.msra.mxu0 %v1772
    %2312 = vmatprep.subr.bf16.mxu0 0
    %2313 = vmatpush1.bf16.msra.mxu0 %v1773
    %2314 = vmatprep.subr.bf16.mxu0 0
    %2315 = vmatpush1.bf16.msra.mxu0 %v1774
    %2316 = vmatprep.subr.bf16.mxu0 0
    %2317 = vmatpush1.bf16.msra.mxu0 %v1775
    %2318 = vmatprep.subr.bf16.mxu0 0
    %2319 = vmatpush1.bf16.msra.mxu0 %v1776
    %2320 = vmatprep.subr.bf16.mxu0 0
    %2321 = vmatpush1.bf16.msra.mxu0 %v1777
    %2322 = vmatprep.subr.bf16.mxu0 0
    %2323 = vmatpush1.bf16.msra.mxu0 %v1778
    %2324 = vmatprep.subr.bf16.mxu0 0
    %2325 = vmatpush1.bf16.msra.mxu0 %v1779
    %2326 = vmatprep.subr.bf16.mxu0 0
    %2327 = vmatpush1.bf16.msra.mxu0 %v1780
    %2328 = vmatprep.mubr.bf16.mxu0 %v932
    %2329 = vmatmul.mubr.bf16.gmra.mrb[0].mxu0 %v931
    %v2330 = vpop.f32.mrb[0].mxu0
    %v2331 = vadd.f32 %v2234, %v2330
    %v2332 = vpop.f32.mrb[0].mxu0
    %v2333 = vpop.f32.mrb[0].mxu0
    %v2334 = vadd.f32 %v2237, %v2333
    %v2335 = vpop.f32.mrb[0].mxu0
    %2336 = vmatprep.mubr.bf16.mxu0 %v944
    %2337 = vmatmul.mubr.bf16.gmra.mrb[0].mxu0 %v943
    %v2338 = vpop.f32.mrb[0].mxu0
    %v2339 = vadd.f32 %v2242, %v2338
    %v2340 = vpop.f32.mrb[0].mxu0
    %v2341 = vpop.f32.mrb[0].mxu0
    %v2342 = vadd.f32 %v2245, %v2341
    %v2343 = vpop.f32.mrb[0].mxu0
    %2344 = vmatprep.mubr.bf16.mxu0 %v956
    %2345 = vmatmul.mubr.bf16.gmra.mrb[0].mxu0 %v955
    %v2346 = vpop.f32.mrb[0].mxu0
    %v2347 = vadd.f32 %v2250, %v2346
    %v2348 = vpop.f32.mrb[0].mxu0
    %v2349 = vpop.f32.mrb[0].mxu0
    %v2350 = vadd.f32 %v2253, %v2349
    %v2351 = vpop.f32.mrb[0].mxu0
    %2352 = vmatprep.mubr.bf16.mxu0 %v968
    %2353 = vmatmul.mubr.bf16.gmra.mrb[0].mxu0 %v967
    %v2354 = vpop.f32.mrb[0].mxu0
    %v2355 = vadd.f32 %v2258, %v2354
    %v2356 = vpop.f32.mrb[0].mxu0
    %v2357 = vpop.f32.mrb[0].mxu0
    %v2358 = vadd.f32 %v2261, %v2357
    %v2359 = vpop.f32.mrb[0].mxu0
    %2360 = vmatprep.mubr.bf16.mxu0 %v986
    %2361 = vmatmul.mubr.bf16.gmra.mrb[0].mxu0 %v985
    %v2362 = vpop.f32.mrb[0].mxu0
    %v2363 = vadd.f32 %v2266, %v2362
    %v2364 = vpop.f32.mrb[0].mxu0
    %v2365 = vpop.f32.mrb[0].mxu0
    %v2366 = vadd.f32 %v2269, %v2365
    %v2367 = vpop.f32.mrb[0].mxu0
    %2368 = vmatprep.mubr.bf16.mxu0 %v998
    %2369 = vmatmul.mubr.bf16.gmra.mrb[0].mxu0 %v997
    %v2370 = vpop.f32.mrb[0].mxu0
    %v2371 = vadd.f32 %v2274, %v2370
    %v2372 = vpop.f32.mrb[0].mxu0
    %v2373 = vpop.f32.mrb[0].mxu0
    %v2374 = vadd.f32 %v2277, %v2373
    %v2375 = vpop.f32.mrb[0].mxu0
    %2376 = vmatprep.mubr.bf16.mxu0 %v1010
    %2377 = vmatmul.mubr.bf16.gmra.mrb[0].mxu0 %v1009
    %v2378 = vpop.f32.mrb[0].mxu0
    %v2379 = vadd.f32 %v2282, %v2378
    %v2380 = vpop.f32.mrb[0].mxu0
    %v2381 = vpop.f32.mrb[0].mxu0
    %v2382 = vadd.f32 %v2285, %v2381
    %v2383 = vpop.f32.mrb[0].mxu0
    %2384 = vmatprep.mubr.bf16.mxu0 %v1022
    %2385 = vmatmul.mubr.bf16.gmra.mrb[0].mxu0 %v1021
    %v2386 = vpop.f32.mrb[0].mxu0
    %v2387 = vadd.f32 %v2290, %v2386
    %v2388 = vpop.f32.mrb[0].mxu0
    %v2389 = vpop.f32.mrb[0].mxu0
    %v2390 = vadd.f32 %v2293, %v2389
    %v2391 = vpop.f32.mrb[0].mxu0
    %2392 = vdwg.mxu0
    %2393 = vmatprep.subr.bf16.mxu0 0
    %2394 = vmatpush1.bf16.msra.mxu0 %v1781
    %2395 = vmatprep.subr.bf16.mxu0 0
    %2396 = vmatpush1.bf16.msra.mxu0 %v1782
    %2397 = vmatprep.subr.bf16.mxu0 0
    %2398 = vmatpush1.bf16.msra.mxu0 %v1783
    %2399 = vmatprep.subr.bf16.mxu0 0
    %2400 = vmatpush1.bf16.msra.mxu0 %v1784
    %2401 = vmatprep.subr.bf16.mxu0 0
    %2402 = vmatpush1.bf16.msra.mxu0 %v1785
    %2403 = vmatprep.subr.bf16.mxu0 0
    %2404 = vmatpush1.bf16.msra.mxu0 %v1786
    %2405 = vmatprep.subr.bf16.mxu0 0
    %2406 = vmatpush1.bf16.msra.mxu0 %v1787
    %2407 = vmatprep.subr.bf16.mxu0 0
    %2408 = vmatpush1.bf16.msra.mxu0 %v1788
    %2409 = vmatprep.subr.bf16.mxu0 0
    %2410 = vmatpush1.bf16.msra.mxu0 %v1789
    %2411 = vmatprep.subr.bf16.mxu0 0
    %2412 = vmatpush1.bf16.msra.mxu0 %v1790
    %2413 = vmatprep.subr.bf16.mxu0 0
    %2414 = vmatpush1.bf16.msra.mxu0 %v1791
    %2415 = vmatprep.subr.bf16.mxu0 0
    %2416 = vmatpush1.bf16.msra.mxu0 %v1792
    %2417 = vmatprep.subr.bf16.mxu0 0
    %2418 = vmatpush1.bf16.msra.mxu0 %v1793
    %2419 = vmatprep.subr.bf16.mxu0 0
    %2420 = vmatpush1.bf16.msra.mxu0 %v1794
    %2421 = vmatprep.subr.bf16.mxu0 0
    %2422 = vmatpush1.bf16.msra.mxu0 %v1795
    %2423 = vmatprep.subr.bf16.mxu0 0
    %2424 = vmatpush1.bf16.msra.mxu0 %v1796
    %2425 = vmatprep.mubr.bf16.mxu0 %v934
    %2426 = vmatmul.mubr.bf16.gmra.mrb[0].mxu0 %v933
    %v2427 = vpop.f32.mrb[0].mxu0
    %v2428 = vadd.f32 %v2331, %v2427
    %v2429 = vpop.f32.mrb[0].mxu0
    %v2430 = vpop.f32.mrb[0].mxu0
    %v2431 = vadd.f32 %v2334, %v2430
    %v2432 = vpop.f32.mrb[0].mxu0
    %2433 = vmatprep.mubr.bf16.mxu0 %v946
    %2434 = vmatmul.mubr.bf16.gmra.mrb[0].mxu0 %v945
    %v2435 = vpop.f32.mrb[0].mxu0
    %v2436 = vadd.f32 %v2339, %v2435
    %v2437 = vpop.f32.mrb[0].mxu0
    %v2438 = vpop.f32.mrb[0].mxu0
    %v2439 = vadd.f32 %v2342, %v2438
    %v2440 = vpop.f32.mrb[0].mxu0
    %2441 = vmatprep.mubr.bf16.mxu0 %v958
    %2442 = vmatmul.mubr.bf16.gmra.mrb[0].mxu0 %v957
    %v2443 = vpop.f32.mrb[0].mxu0
    %v2444 = vadd.f32 %v2347, %v2443
    %v2445 = vpop.f32.mrb[0].mxu0
    %v2446 = vpop.f32.mrb[0].mxu0
    %v2447 = vadd.f32 %v2350, %v2446
    %v2448 = vpop.f32.mrb[0].mxu0
    %2449 = vmatprep.mubr.bf16.mxu0 %v970
    %2450 = vmatmul.mubr.bf16.gmra.mrb[0].mxu0 %v969
    %v2451 = vpop.f32.mrb[0].mxu0
    %v2452 = vadd.f32 %v2355, %v2451
    %v2453 = vpop.f32.mrb[0].mxu0
    %v2454 = vpop.f32.mrb[0].mxu0
    %v2455 = vadd.f32 %v2358, %v2454
    %v2456 = vpop.f32.mrb[0].mxu0
    %2457 = vmatprep.mubr.bf16.mxu0 %v988
    %2458 = vmatmul.mubr.bf16.gmra.mrb[0].mxu0 %v987
    %v2459 = vpop.f32.mrb[0].mxu0
    %v2460 = vadd.f32 %v2363, %v2459
    %v2461 = vpop.f32.mrb[0].mxu0
    %v2462 = vpop.f32.mrb[0].mxu0
    %v2463 = vadd.f32 %v2366, %v2462
    %v2464 = vpop.f32.mrb[0].mxu0
    %2465 = vmatprep.mubr.bf16.mxu0 %v1000
    %2466 = vmatmul.mubr.bf16.gmra.mrb[0].mxu0 %v999
    %v2467 = vpop.f32.mrb[0].mxu0
    %v2468 = vadd.f32 %v2371, %v2467
    %v2469 = vpop.f32.mrb[0].mxu0
    %v2470 = vpop.f32.mrb[0].mxu0
    %v2471 = vadd.f32 %v2374, %v2470
    %v2472 = vpop.f32.mrb[0].mxu0
    %2473 = vmatprep.mubr.bf16.mxu0 %v1012
    %2474 = vmatmul.mubr.bf16.gmra.mrb[0].mxu0 %v1011
    %v2475 = vpop.f32.mrb[0].mxu0
    %v2476 = vadd.f32 %v2379, %v2475
    %v2477 = vpop.f32.mrb[0].mxu0
    %v2478 = vpop.f32.mrb[0].mxu0
    %v2479 = vadd.f32 %v2382, %v2478
    %v2480 = vpop.f32.mrb[0].mxu0
    %2481 = vmatprep.mubr.bf16.mxu0 %v1024
    %2482 = vmatmul.mubr.bf16.gmra.mrb[0].mxu0 %v1023
    %v2483 = vpop.f32.mrb[0].mxu0
    %v2484 = vadd.f32 %v2387, %v2483
    %v2485 = vpop.f32.mrb[0].mxu0
    %v2486 = vpop.f32.mrb[0].mxu0
    %v2487 = vadd.f32 %v2390, %v2486
    %v2488 = vpop.f32.mrb[0].mxu0
    %2489 = vdwg.mxu0
    %2490 = vmatprep.subr.bf16.mxu0 0
    %2491 = vmatpush1.bf16.msra.mxu0 %v1797
    %2492 = vmatprep.subr.bf16.mxu0 0
    %2493 = vmatpush1.bf16.msra.mxu0 %v1798
    %2494 = vmatprep.subr.bf16.mxu0 0
    %2495 = vmatpush1.bf16.msra.mxu0 %v1799
    %2496 = vmatprep.subr.bf16.mxu0 0
    %2497 = vmatpush1.bf16.msra.mxu0 %v1800
    %2498 = vmatprep.subr.bf16.mxu0 0
    %2499 = vmatpush1.bf16.msra.mxu0 %v1801
    %2500 = vmatprep.subr.bf16.mxu0 0
    %2501 = vmatpush1.bf16.msra.mxu0 %v1802
    %2502 = vmatprep.subr.bf16.mxu0 0
    %2503 = vmatpush1.bf16.msra.mxu0 %v1803
    %2504 = vmatprep.subr.bf16.mxu0 0
    %2505 = vmatpush1.bf16.msra.mxu0 %v1804
    %2506 = vmatprep.subr.bf16.mxu0 0
    %2507 = vmatpush1.bf16.msra.mxu0 %v1805
    %2508 = vmatprep.subr.bf16.mxu0 0
    %2509 = vmatpush1.bf16.msra.mxu0 %v1806
    %2510 = vmatprep.subr.bf16.mxu0 0
    %2511 = vmatpush1.bf16.msra.mxu0 %v1807
    %2512 = vmatprep.subr.bf16.mxu0 0
    %2513 = vmatpush1.bf16.msra.mxu0 %v1808
    %2514 = vmatprep.subr.bf16.mxu0 0
    %2515 = vmatpush1.bf16.msra.mxu0 %v1809
    %2516 = vmatprep.subr.bf16.mxu0 0
    %2517 = vmatpush1.bf16.msra.mxu0 %v1810
    %2518 = vmatprep.subr.bf16.mxu0 0
    %2519 = vmatpush1.bf16.msra.mxu0 %v1811
    %2520 = vmatprep.subr.bf16.mxu0 0
    %2521 = vmatpush1.bf16.msra.mxu0 %v1812
    %2522 = vmatprep.mubr.bf16.mxu0 %v936
    %2523 = vmatmul.mubr.bf16.gmra.mrb[0].mxu0 %v935
    %v2524 = vpop.f32.mrb[0].mxu0
    %v2525 = vadd.f32 %v2428, %v2524
    %v2526 = vpop.f32.mrb[0].mxu0
    %v2527 = vpop.f32.mrb[0].mxu0
    %v2528 = vadd.f32 %v2431, %v2527
    %v2529 = vpop.f32.mrb[0].mxu0
    %2530 = vmatprep.mubr.bf16.mxu0 %v948
    %2531 = vmatmul.mubr.bf16.gmra.mrb[0].mxu0 %v947
    %v2532 = vpop.f32.mrb[0].mxu0
    %v2533 = vadd.f32 %v2436, %v2532
    %v2534 = vpop.f32.mrb[0].mxu0
    %v2535 = vpop.f32.mrb[0].mxu0
    %v2536 = vadd.f32 %v2439, %v2535
    %v2537 = vpop.f32.mrb[0].mxu0
    %2538 = vmatprep.mubr.bf16.mxu0 %v960
    %2539 = vmatmul.mubr.bf16.gmra.mrb[0].mxu0 %v959
    %v2540 = vpop.f32.mrb[0].mxu0
    %v2541 = vadd.f32 %v2444, %v2540
    %v2542 = vpop.f32.mrb[0].mxu0
    %v2543 = vpop.f32.mrb[0].mxu0
    %v2544 = vadd.f32 %v2447, %v2543
    %v2545 = vpop.f32.mrb[0].mxu0
    %2546 = vmatprep.mubr.bf16.mxu0 %v972
    %2547 = vmatmul.mubr.bf16.gmra.mrb[0].mxu0 %v971
    %v2548 = vpop.f32.mrb[0].mxu0
    %v2549 = vadd.f32 %v2452, %v2548
    %v2550 = vpop.f32.mrb[0].mxu0
    %v2551 = vpop.f32.mrb[0].mxu0
    %v2552 = vadd.f32 %v2455, %v2551
    %v2553 = vpop.f32.mrb[0].mxu0
    %2554 = vmatprep.mubr.bf16.mxu0 %v990
    %2555 = vmatmul.mubr.bf16.gmra.mrb[0].mxu0 %v989
    %v2556 = vpop.f32.mrb[0].mxu0
    %v2557 = vadd.f32 %v2460, %v2556
    %v2558 = vpop.f32.mrb[0].mxu0
    %v2559 = vpop.f32.mrb[0].mxu0
    %v2560 = vadd.f32 %v2463, %v2559
    %v2561 = vpop.f32.mrb[0].mxu0
    %2562 = vmatprep.mubr.bf16.mxu0 %v1002
    %2563 = vmatmul.mubr.bf16.gmra.mrb[0].mxu0 %v1001
    %v2564 = vpop.f32.mrb[0].mxu0
    %v2565 = vadd.f32 %v2468, %v2564
    %v2566 = vpop.f32.mrb[0].mxu0
    %v2567 = vpop.f32.mrb[0].mxu0
    %v2568 = vadd.f32 %v2471, %v2567
    %v2569 = vpop.f32.mrb[0].mxu0
    %2570 = vmatprep.mubr.bf16.mxu0 %v1014
    %2571 = vmatmul.mubr.bf16.gmra.mrb[0].mxu0 %v1013
    %v2572 = vpop.f32.mrb[0].mxu0
    %v2573 = vadd.f32 %v2476, %v2572
    %v2574 = vpop.f32.mrb[0].mxu0
    %v2575 = vpop.f32.mrb[0].mxu0
    %v2576 = vadd.f32 %v2479, %v2575
    %v2577 = vpop.f32.mrb[0].mxu0
    %2578 = vmatprep.mubr.bf16.mxu0 %v1026
    %2579 = vmatmul.mubr.bf16.gmra.mrb[0].mxu0 %v1025
    %v2580 = vpop.f32.mrb[0].mxu0
    %v2581 = vadd.f32 %v2484, %v2580
    %v2582 = vpop.f32.mrb[0].mxu0
    %v2583 = vpop.f32.mrb[0].mxu0
    %v2584 = vadd.f32 %v2487, %v2583
    %v2585 = vpop.f32.mrb[0].mxu0
    %2586 = vdwg.mxu0
    %2587 = vmatprep.subr.bf16.mxu0 0
    %2588 = vmatpush1.bf16.msra.mxu0 %v1813
    %2589 = vmatprep.subr.bf16.mxu0 0
    %2590 = vmatpush1.bf16.msra.mxu0 %v1814
    %2591 = vmatprep.subr.bf16.mxu0 0
    %2592 = vmatpush1.bf16.msra.mxu0 %v1815
    %2593 = vmatprep.subr.bf16.mxu0 0
    %2594 = vmatpush1.bf16.msra.mxu0 %v1816
    %2595 = vmatprep.subr.bf16.mxu0 0
    %2596 = vmatpush1.bf16.msra.mxu0 %v1817
    %2597 = vmatprep.subr.bf16.mxu0 0
    %2598 = vmatpush1.bf16.msra.mxu0 %v1818
    %2599 = vmatprep.subr.bf16.mxu0 0
    %2600 = vmatpush1.bf16.msra.mxu0 %v1819
    %2601 = vmatprep.subr.bf16.mxu0 0
    %2602 = vmatpush1.bf16.msra.mxu0 %v1820
    %2603 = vmatprep.subr.bf16.mxu0 0
    %2604 = vmatpush1.bf16.msra.mxu0 %v1821
    %2605 = vmatprep.subr.bf16.mxu0 0
    %2606 = vmatpush1.bf16.msra.mxu0 %v1822
    %2607 = vmatprep.subr.bf16.mxu0 0
    %2608 = vmatpush1.bf16.msra.mxu0 %v1823
    %2609 = vmatprep.subr.bf16.mxu0 0
    %2610 = vmatpush1.bf16.msra.mxu0 %v1824
    %2611 = vmatprep.subr.bf16.mxu0 0
    %2612 = vmatpush1.bf16.msra.mxu0 %v1825
    %2613 = vmatprep.subr.bf16.mxu0 0
    %2614 = vmatpush1.bf16.msra.mxu0 %v1826
    %2615 = vmatprep.subr.bf16.mxu0 0
    %2616 = vmatpush1.bf16.msra.mxu0 %v1827
    %2617 = vmatprep.subr.bf16.mxu0 0
    %2618 = vmatpush1.bf16.msra.mxu0 %v1828
    %2619 = vmatprep.mubr.bf16.mxu0 %v938
    %2620 = vmatmul.mubr.bf16.gmra.mrb[0].mxu0 %v937
    %v2621 = vpop.f32.mrb[0].mxu0
    %v2622 = vadd.f32 %v2525, %v2621
    %v2623 = vpop.f32.mrb[0].mxu0
    %v2624 = vpop.f32.mrb[0].mxu0
    %v2625 = vadd.f32 %v2528, %v2624
    %v2626 = vpop.f32.mrb[0].mxu0
    %2627 = vmatprep.mubr.bf16.mxu0 %v950
    %2628 = vmatmul.mubr.bf16.gmra.mrb[0].mxu0 %v949
    %v2629 = vpop.f32.mrb[0].mxu0
    %v2630 = vadd.f32 %v2533, %v2629
    %v2631 = vpop.f32.mrb[0].mxu0
    %v2632 = vpop.f32.mrb[0].mxu0
    %v2633 = vadd.f32 %v2536, %v2632
    %v2634 = vpop.f32.mrb[0].mxu0
    %2635 = vmatprep.mubr.bf16.mxu0 %v962
    %2636 = vmatmul.mubr.bf16.gmra.mrb[0].mxu0 %v961
    %v2637 = vpop.f32.mrb[0].mxu0
    %v2638 = vadd.f32 %v2541, %v2637
    %v2639 = vpop.f32.mrb[0].mxu0
    %v2640 = vpop.f32.mrb[0].mxu0
    %v2641 = vadd.f32 %v2544, %v2640
    %v2642 = vpop.f32.mrb[0].mxu0
    %2643 = vmatprep.mubr.bf16.mxu0 %v974
    %2644 = vmatmul.mubr.bf16.gmra.mrb[0].mxu0 %v973
    %v2645 = vpop.f32.mrb[0].mxu0
    %v2646 = vadd.f32 %v2549, %v2645
    %v2647 = vpop.f32.mrb[0].mxu0
    %v2648 = vpop.f32.mrb[0].mxu0
    %v2649 = vadd.f32 %v2552, %v2648
    %v2650 = vpop.f32.mrb[0].mxu0
    %2651 = vmatprep.mubr.bf16.mxu0 %v992
    %2652 = vmatmul.mubr.bf16.gmra.mrb[0].mxu0 %v991
    %v2653 = vpop.f32.mrb[0].mxu0
    %v2654 = vadd.f32 %v2557, %v2653
    %v2655 = vpop.f32.mrb[0].mxu0
    %v2656 = vpop.f32.mrb[0].mxu0
    %v2657 = vadd.f32 %v2560, %v2656
    %v2658 = vpop.f32.mrb[0].mxu0
    %2659 = vmatprep.mubr.bf16.mxu0 %v1004
    %2660 = vmatmul.mubr.bf16.gmra.mrb[0].mxu0 %v1003
    %v2661 = vpop.f32.mrb[0].mxu0
    %v2662 = vadd.f32 %v2565, %v2661
    %v2663 = vpop.f32.mrb[0].mxu0
    %v2664 = vpop.f32.mrb[0].mxu0
    %v2665 = vadd.f32 %v2568, %v2664
    %v2666 = vpop.f32.mrb[0].mxu0
    %2667 = vmatprep.mubr.bf16.mxu0 %v1016
    %2668 = vmatmul.mubr.bf16.gmra.mrb[0].mxu0 %v1015
    %v2669 = vpop.f32.mrb[0].mxu0
    %v2670 = vadd.f32 %v2573, %v2669
    %v2671 = vpop.f32.mrb[0].mxu0
    %v2672 = vpop.f32.mrb[0].mxu0
    %v2673 = vadd.f32 %v2576, %v2672
    %v2674 = vpop.f32.mrb[0].mxu0
    %2675 = vmatprep.mubr.bf16.mxu0 %v1028
    %2676 = vmatmul.mubr.bf16.gmra.mrb[0].mxu0 %v1027
    %v2677 = vpop.f32.mrb[0].mxu0
    %v2678 = vadd.f32 %v2581, %v2677
    %v2679 = vpop.f32.mrb[0].mxu0
    %v2680 = vpop.f32.mrb[0].mxu0
    %v2681 = vadd.f32 %v2584, %v2680
    %v2682 = vpop.f32.mrb[0].mxu0
    %2683 = vdwg.mxu0
    %2684 = vmatprep.subr.bf16.mxu0 0
    %2685 = vmatpush1.bf16.msra.mxu0 %v1829
    %2686 = vmatprep.subr.bf16.mxu0 0
    %2687 = vmatpush1.bf16.msra.mxu0 %v1830
    %2688 = vmatprep.subr.bf16.mxu0 0
    %2689 = vmatpush1.bf16.msra.mxu0 %v1831
    %2690 = vmatprep.subr.bf16.mxu0 0
    %2691 = vmatpush1.bf16.msra.mxu0 %v1832
    %2692 = vmatprep.subr.bf16.mxu0 0
    %2693 = vmatpush1.bf16.msra.mxu0 %v1833
    %2694 = vmatprep.subr.bf16.mxu0 0
    %2695 = vmatpush1.bf16.msra.mxu0 %v1834
    %2696 = vmatprep.subr.bf16.mxu0 0
    %2697 = vmatpush1.bf16.msra.mxu0 %v1835
    %2698 = vmatprep.subr.bf16.mxu0 0
    %2699 = vmatpush1.bf16.msra.mxu0 %v1836
    %2700 = vmatprep.subr.bf16.mxu0 0
    %2701 = vmatpush1.bf16.msra.mxu0 %v1837
    %2702 = vmatprep.subr.bf16.mxu0 0
    %2703 = vmatpush1.bf16.msra.mxu0 %v1838
    %2704 = vmatprep.subr.bf16.mxu0 0
    %2705 = vmatpush1.bf16.msra.mxu0 %v1839
    %2706 = vmatprep.subr.bf16.mxu0 0
    %2707 = vmatpush1.bf16.msra.mxu0 %v1840
    %2708 = vmatprep.subr.bf16.mxu0 0
    %2709 = vmatpush1.bf16.msra.mxu0 %v1841
    %2710 = vmatprep.subr.bf16.mxu0 0
    %2711 = vmatpush1.bf16.msra.mxu0 %v1842
    %2712 = vmatprep.subr.bf16.mxu0 0
    %2713 = vmatpush1.bf16.msra.mxu0 %v1843
    %2714 = vmatprep.subr.bf16.mxu0 0
    %2715 = vmatpush1.bf16.msra.mxu0 %v1844
    %2716 = vmatprep.mubr.bf16.mxu0 %v940
    %2717 = vmatmul.mubr.bf16.gmra.mrb[0].mxu0 %v939
    %v2718 = vpop.f32.mrb[0].mxu0
    %v2719 = vadd.f32 %v2622, %v2718
    %v2720 = vpop.f32.mrb[0].mxu0
    %v2721 = vpop.f32.mrb[0].mxu0
    %v2722 = vadd.f32 %v2625, %v2721
    %v2723 = vpop.f32.mrb[0].mxu0
    %2724 = vmatprep.mubr.bf16.mxu0 %v952
    %2725 = vmatmul.mubr.bf16.gmra.mrb[0].mxu0 %v951
    %v2726 = vpop.f32.mrb[0].mxu0
    %v2727 = vadd.f32 %v2630, %v2726
    %v2728 = vpop.f32.mrb[0].mxu0
    %v2729 = vpop.f32.mrb[0].mxu0
    %v2730 = vadd.f32 %v2633, %v2729
    %v2731 = vpop.f32.mrb[0].mxu0
    %2732 = vmatprep.mubr.bf16.mxu0 %v964
    %2733 = vmatmul.mubr.bf16.gmra.mrb[0].mxu0 %v963
    %v2734 = vpop.f32.mrb[0].mxu0
    %v2735 = vadd.f32 %v2638, %v2734
    %v2736 = vpop.f32.mrb[0].mxu0
    %v2737 = vpop.f32.mrb[0].mxu0
    %v2738 = vadd.f32 %v2641, %v2737
    %v2739 = vpop.f32.mrb[0].mxu0
    %2740 = vmatprep.mubr.bf16.mxu0 %v976
    %2741 = vmatmul.mubr.bf16.gmra.mrb[0].mxu0 %v975
    %v2742 = vpop.f32.mrb[0].mxu0
    %v2743 = vadd.f32 %v2646, %v2742
    %v2744 = vpop.f32.mrb[0].mxu0
    %v2745 = vpop.f32.mrb[0].mxu0
    %v2746 = vadd.f32 %v2649, %v2745
    %v2747 = vpop.f32.mrb[0].mxu0
    %2748 = vmatprep.mubr.bf16.mxu0 %v994
    %2749 = vmatmul.mubr.bf16.gmra.mrb[0].mxu0 %v993
    %v2750 = vpop.f32.mrb[0].mxu0
    %v2751 = vadd.f32 %v2654, %v2750
    %v2752 = vpop.f32.mrb[0].mxu0
    %v2753 = vpop.f32.mrb[0].mxu0
    %v2754 = vadd.f32 %v2657, %v2753
    %v2755 = vpop.f32.mrb[0].mxu0
    %2756 = vmatprep.mubr.bf16.mxu0 %v1006
    %2757 = vmatmul.mubr.bf16.gmra.mrb[0].mxu0 %v1005
    %v2758 = vpop.f32.mrb[0].mxu0
    %v2759 = vadd.f32 %v2662, %v2758
    %v2760 = vpop.f32.mrb[0].mxu0
    %v2761 = vpop.f32.mrb[0].mxu0
    %v2762 = vadd.f32 %v2665, %v2761
    %v2763 = vpop.f32.mrb[0].mxu0
    %2764 = vmatprep.mubr.bf16.mxu0 %v1018
    %2765 = vmatmul.mubr.bf16.gmra.mrb[0].mxu0 %v1017
    %v2766 = vpop.f32.mrb[0].mxu0
    %v2767 = vadd.f32 %v2670, %v2766
    %v2768 = vpop.f32.mrb[0].mxu0
    %v2769 = vpop.f32.mrb[0].mxu0
    %v2770 = vadd.f32 %v2673, %v2769
    %v2771 = vpop.f32.mrb[0].mxu0
    %2772 = vmatprep.mubr.bf16.mxu0 %v1030
    %2773 = vmatmul.mubr.bf16.gmra.mrb[0].mxu0 %v1029
    %v2774 = vpop.f32.mrb[0].mxu0
    %v2775 = vadd.f32 %v2678, %v2774
    %v2776 = vpop.f32.mrb[0].mxu0
    %v2777 = vpop.f32.mrb[0].mxu0
    %v2778 = vadd.f32 %v2681, %v2777
    %v2779 = vpop.f32.mrb[0].mxu0
    %2780 = vdwg.mxu0
    %2781 = vmatprep.subr.bf16.mxu0 0
    %2782 = vmatpush1.bf16.msra.mxu0 %v1845
    %2783 = vmatprep.subr.bf16.mxu0 0
    %2784 = vmatpush1.bf16.msra.mxu0 %v1846
    %2785 = vmatprep.subr.bf16.mxu0 0
    %2786 = vmatpush1.bf16.msra.mxu0 %v1847
    %2787 = vmatprep.subr.bf16.mxu0 0
    %2788 = vmatpush1.bf16.msra.mxu0 %v1848
    %2789 = vmatprep.subr.bf16.mxu0 0
    %2790 = vmatpush1.bf16.msra.mxu0 %v1849
    %2791 = vmatprep.subr.bf16.mxu0 0
    %2792 = vmatpush1.bf16.msra.mxu0 %v1850
    %2793 = vmatprep.subr.bf16.mxu0 0
    %2794 = vmatpush1.bf16.msra.mxu0 %v1851
    %2795 = vmatprep.subr.bf16.mxu0 0
    %2796 = vmatpush1.bf16.msra.mxu0 %v1852
    %2797 = vmatprep.subr.bf16.mxu0 0
    %2798 = vmatpush1.bf16.msra.mxu0 %v1853
    %2799 = vmatprep.subr.bf16.mxu0 0
    %2800 = vmatpush1.bf16.msra.mxu0 %v1854
    %2801 = vmatprep.subr.bf16.mxu0 0
    %2802 = vmatpush1.bf16.msra.mxu0 %v1855
    %2803 = vmatprep.subr.bf16.mxu0 0
    %2804 = vmatpush1.bf16.msra.mxu0 %v1856
    %2805 = vmatprep.subr.bf16.mxu0 0
    %2806 = vmatpush1.bf16.msra.mxu0 %v1857
    %2807 = vmatprep.subr.bf16.mxu0 0
    %2808 = vmatpush1.bf16.msra.mxu0 %v1858
    %2809 = vmatprep.subr.bf16.mxu0 0
    %2810 = vmatpush1.bf16.msra.mxu0 %v1859
    %2811 = vmatprep.subr.bf16.mxu0 0
    %2812 = vmatpush1.bf16.msra.mxu0 %v1860
    %2813 = vmatprep.mubr.bf16.mxu0 %v942
    %2814 = vmatmul.mubr.bf16.gmra.mrb[0].mxu0 %v941
    %v2815 = vpop.f32.mrb[0].mxu0
    %v2816 = vadd.f32 %v2719, %v2815
    %v2817 = vpop.f32.mrb[0].mxu0
    %v2818 = vpop.f32.mrb[0].mxu0
    %v2819 = vadd.f32 %v2722, %v2818
    %v2820 = vpop.f32.mrb[0].mxu0
    %2821 = vmatprep.mubr.bf16.mxu0 %v954
    %2822 = vmatmul.mubr.bf16.gmra.mrb[0].mxu0 %v953
    %v2823 = vpop.f32.mrb[0].mxu0
    %v2824 = vadd.f32 %v2727, %v2823
    %v2825 = vpop.f32.mrb[0].mxu0
    %v2826 = vpop.f32.mrb[0].mxu0
    %v2827 = vadd.f32 %v2730, %v2826
    %v2828 = vpop.f32.mrb[0].mxu0
    %2829 = vmatprep.mubr.bf16.mxu0 %v966
    %2830 = vmatmul.mubr.bf16.gmra.mrb[0].mxu0 %v965
    %v2831 = vpop.f32.mrb[0].mxu0
    %v2832 = vadd.f32 %v2735, %v2831
    %v2833 = vpop.f32.mrb[0].mxu0
    %v2834 = vpop.f32.mrb[0].mxu0
    %v2835 = vadd.f32 %v2738, %v2834
    %v2836 = vpop.f32.mrb[0].mxu0
    %2837 = vmatprep.mubr.bf16.mxu0 %v978
    %2838 = vmatmul.mubr.bf16.gmra.mrb[0].mxu0 %v977
    %v2839 = vpop.f32.mrb[0].mxu0
    %v2840 = vadd.f32 %v2743, %v2839
    %v2841 = vpop.f32.mrb[0].mxu0
    %v2842 = vpop.f32.mrb[0].mxu0
    %v2843 = vadd.f32 %v2746, %v2842
    %v2844 = vpop.f32.mrb[0].mxu0
    %2845 = vmatprep.mubr.bf16.mxu0 %v996
    %2846 = vmatmul.mubr.bf16.gmra.mrb[0].mxu0 %v995
    %v2847 = vpop.f32.mrb[0].mxu0
    %v2848 = vadd.f32 %v2751, %v2847
    %v2849 = vpop.f32.mrb[0].mxu0
    %v2850 = vpop.f32.mrb[0].mxu0
    %v2851 = vadd.f32 %v2754, %v2850
    %v2852 = vpop.f32.mrb[0].mxu0
    %2853 = vmatprep.mubr.bf16.mxu0 %v1008
    %2854 = vmatmul.mubr.bf16.gmra.mrb[0].mxu0 %v1007
    %v2855 = vpop.f32.mrb[0].mxu0
    %v2856 = vadd.f32 %v2759, %v2855
    %v2857 = vpop.f32.mrb[0].mxu0
    %v2858 = vpop.f32.mrb[0].mxu0
    %v2859 = vadd.f32 %v2762, %v2858
    %v2860 = vpop.f32.mrb[0].mxu0
    %2861 = vmatprep.mubr.bf16.mxu0 %v1020
    %2862 = vmatmul.mubr.bf16.gmra.mrb[0].mxu0 %v1019
    %v2863 = vpop.f32.mrb[0].mxu0
    %v2864 = vadd.f32 %v2767, %v2863
    %v2865 = vpop.f32.mrb[0].mxu0
    %v2866 = vpop.f32.mrb[0].mxu0
    %v2867 = vadd.f32 %v2770, %v2866
    %v2868 = vpop.f32.mrb[0].mxu0
    %2869 = vmatprep.mubr.bf16.mxu0 %v1032
    %2870 = vmatmul.mubr.bf16.gmra.mrb[0].mxu0 %v1031
    %v2871 = vpop.f32.mrb[0].mxu0
    %v2872 = vadd.f32 %v2775, %v2871
    %v2873 = vpop.f32.mrb[0].mxu0
    %v2874 = vpop.f32.mrb[0].mxu0
    %v2875 = vadd.f32 %v2778, %v2874
    %v2876 = vpop.f32.mrb[0].mxu0
    %2877 = vdwg.mxu0
    %vm2878 = vcmp.gt.f32.partialorder %v2816, 0.0
    %vm2879 = vcmp.gt.f32.partialorder %v2819, 0.0
    %vm2880 = vcmp.gt.f32.partialorder %v2824, 0.0
    %vm2881 = vcmp.gt.f32.partialorder %v2827, 0.0
    %vm2882 = vcmp.gt.f32.partialorder %v2832, 0.0
    %vm2883 = vcmp.gt.f32.partialorder %v2835, 0.0
    %vm2884 = vcmp.gt.f32.partialorder %v2840, 0.0
    %vm2885 = vcmp.gt.f32.partialorder %v2843, 0.0
    %vm2886 = vcmp.gt.f32.partialorder %v2848, 0.0
    %vm2887 = vcmp.gt.f32.partialorder %v2851, 0.0
    %vm2888 = vcmp.gt.f32.partialorder %v2856, 0.0
    %vm2889 = vcmp.gt.f32.partialorder %v2859, 0.0
    %vm2890 = vcmp.gt.f32.partialorder %v2864, 0.0
    %vm2891 = vcmp.gt.f32.partialorder %v2867, 0.0
    %vm2892 = vcmp.gt.f32.partialorder %v2872, 0.0
    %vm2893 = vcmp.gt.f32.partialorder %v2875, 0.0
    %v2894 = vmin.f32 %v2816, 0.0
    %v2895 = vmin.f32 %v2819, 0.0
    %v2896 = vmin.f32 %v2824, 0.0
    %v2897 = vmin.f32 %v2827, 0.0
    %v2898 = vmin.f32 %v2832, 0.0
    %v2899 = vmin.f32 %v2835, 0.0
    %v2900 = vmin.f32 %v2840, 0.0
    %v2901 = vmin.f32 %v2843, 0.0
    %v2902 = vmin.f32 %v2848, 0.0
    %v2903 = vmin.f32 %v2851, 0.0
    %v2904 = vmin.f32 %v2856, 0.0
    %v2905 = vmin.f32 %v2859, 0.0
    %v2906 = vmin.f32 %v2864, 0.0
    %v2907 = vmin.f32 %v2867, 0.0
    %v2908 = vmin.f32 %v2872, 0.0
    %v2909 = vmin.f32 %v2875, 0.0
    %v2910 = vmul.f32 %v2894, 1.442695
    %v2911 = vpow.pop %v2910
    %v2912 = vmul.f32 %v2895, 1.442695
    %v2913 = vpow.pop %v2912
    %v2914 = vmul.f32 %v2896, 1.442695
    %v2915 = vpow.pop %v2914
    %v2916 = vmul.f32 %v2897, 1.442695
    %v2917 = vpow.pop %v2916
    %v2918 = vmul.f32 %v2898, 1.442695
    %v2919 = vpow.pop %v2918
    %v2920 = vmul.f32 %v2899, 1.442695
    %v2921 = vpow.pop %v2920
    %v2922 = vmul.f32 %v2900, 1.442695
    %v2923 = vpow.pop %v2922
    %v2924 = vmul.f32 %v2901, 1.442695
    %v2925 = vpow.pop %v2924
    %v2926 = vmul.f32 %v2902, 1.442695
    %v2927 = vpow.pop %v2926
    %v2928 = vmul.f32 %v2903, 1.442695
    %v2929 = vpow.pop %v2928
    %v2930 = vmul.f32 %v2904, 1.442695
    %v2931 = vpow.pop %v2930
    %v2932 = vmul.f32 %v2905, 1.442695
    %v2933 = vpow.pop %v2932
    %v2934 = vmul.f32 %v2906, 1.442695
    %v2935 = vpow.pop %v2934
    %v2936 = vmul.f32 %v2907, 1.442695
    %v2937 = vpow.pop %v2936
    %v2938 = vmul.f32 %v2908, 1.442695
    %v2939 = vpow.pop %v2938
    %v2940 = vmul.f32 %v2909, 1.442695
    %v2941 = vpow.pop %v2940
    %v2942 = vsub.f32 %v2911, 1.0
    %v2943 = vsub.f32 %v2913, 1.0
    %v2944 = vsub.f32 %v2915, 1.0
    %v2945 = vsub.f32 %v2917, 1.0
    %v2946 = vsub.f32 %v2919, 1.0
    %v2947 = vsub.f32 %v2921, 1.0
    %v2948 = vsub.f32 %v2923, 1.0
    %v2949 = vsub.f32 %v2925, 1.0
    %v2950 = vsub.f32 %v2927, 1.0
    %v2951 = vsub.f32 %v2929, 1.0
    %v2952 = vsub.f32 %v2931, 1.0
    %v2953 = vsub.f32 %v2933, 1.0
    %v2954 = vsub.f32 %v2935, 1.0
    %v2955 = vsub.f32 %v2937, 1.0
    %v2956 = vsub.f32 %v2939, 1.0
    %v2957 = vsub.f32 %v2941, 1.0
    %v2958 = vsel %vm2878, %v2816, %v2942
    %v2959 = vsel %vm2879, %v2819, %v2943
    %v2960 = vsel %vm2880, %v2824, %v2944
    %v2961 = vsel %vm2881, %v2827, %v2945
    %v2962 = vsel %vm2882, %v2832, %v2946
    %v2963 = vsel %vm2883, %v2835, %v2947
    %v2964 = vsel %vm2884, %v2840, %v2948
    %v2965 = vsel %vm2885, %v2843, %v2949
    %v2966 = vsel %vm2886, %v2848, %v2950
    %v2967 = vsel %vm2887, %v2851, %v2951
    %v2968 = vsel %vm2888, %v2856, %v2952
    %v2969 = vsel %vm2889, %v2859, %v2953
    %v2970 = vsel %vm2890, %v2864, %v2954
    %v2971 = vsel %vm2891, %v2867, %v2955
    %v2972 = vsel %vm2892, %v2872, %v2956
    %v2973 = vsel %vm2893, %v2875, %v2957
    %v2974 = vpack.c.bf16 %v2958, %v2958
    %v2975 = vpack.c.bf16 %v2959, %v2959
    %v2976 = vpack.c.bf16 %v2960, %v2960
    %v2977 = vpack.c.bf16 %v2961, %v2961
    %v2978 = vpack.c.bf16 %v2962, %v2962
    %v2979 = vpack.c.bf16 %v2963, %v2963
    %v2980 = vpack.c.bf16 %v2964, %v2964
    %v2981 = vpack.c.bf16 %v2965, %v2965
    %v2982 = vpack.c.bf16 %v2966, %v2966
    %v2983 = vpack.c.bf16 %v2967, %v2967
    %v2984 = vpack.c.bf16 %v2968, %v2968
    %v2985 = vpack.c.bf16 %v2969, %v2969
    %v2986 = vpack.c.bf16 %v2970, %v2970
    %v2987 = vpack.c.bf16 %v2971, %v2971
    %v2988 = vpack.c.bf16 %v2972, %v2972
    %v2989 = vpack.c.bf16 %v2973, %v2973
    %2990 = vst [vmem:[#allocation5] sm:$0xf] %v2974
    %2991 = vst [vmem:[#allocation5 + $0x4] sm:$0xf] %v2975
    %2992 = vst [vmem:[#allocation5 + $0x8] sm:$0xf] %v2976
    %2993 = vst [vmem:[#allocation5 + $0xc] sm:$0xf] %v2977
    %2994 = vst [vmem:[#allocation5 + $0x10] sm:$0xf] %v2978
    %2995 = vst [vmem:[#allocation5 + $0x14] sm:$0xf] %v2979
    %2996 = vst [vmem:[#allocation5 + $0x18] sm:$0xf] %v2980
    %2997 = vst [vmem:[#allocation5 + $0x1c] sm:$0xf] %v2981
    %2998 = vst [vmem:[#allocation5 + $0x20] sm:$0xf] %v2982
    %2999 = vst [vmem:[#allocation5 + $0x24] sm:$0xf] %v2983
    %3000 = vst [vmem:[#allocation5 + $0x28] sm:$0xf] %v2984
    %3001 = vst [vmem:[#allocation5 + $0x2c] sm:$0xf] %v2985
    %3002 = vst [vmem:[#allocation5 + $0x30] sm:$0xf] %v2986
    %3003 = vst [vmem:[#allocation5 + $0x34] sm:$0xf] %v2987
    %3004 = vst [vmem:[#allocation5 + $0x38] sm:$0xf] %v2988
    %3005 = vst [vmem:[#allocation5 + $0x3c] sm:$0xf] %v2989
    // Predicated region
    $region18: #{tpu_custom_call.1} parent=1 // pred_check
      _
    $region19: #{tpu_custom_call.1} parent=1 // pred_check_branch
      %3007 = sbr.rel (0) target = $region21
    $region20: #{tpu_custom_call.1} parent=1 // pred_region
      %s3009 = ssub.s32 1024, 1024
      %3010 = vsyncadd [#allocation4], %s3009
      %s3011 = sshll.u32 [#allocation5], 4
      %s3012 = int_to_ptr.vmem [resolvable:$true] %s3011
      %3017 = dma.vmem_to_hbm [thread:$0]  %s3012, 1024, %s3, [#allocation4], 64, 64, 4
    $region21: #{tpu_custom_call.1} parent=1 // pred_fallthru
      _
    // Predicated region
    $region22: #{tpu_custom_call.1} parent=1 // pred_check
      _
    $region23: #{tpu_custom_call.1} parent=1 // pred_check_branch
      %3019 = sbr.rel (0) target = $region25
    $region24: #{tpu_custom_call.1} parent=1 // pred_region
      %3020 = dma.done [#allocation4], 1024
    $region25: #{tpu_custom_call.1} parent=1 // pred_fallthru
      _
    %3021 = vsyncpa [#allocation3], 1
    %3022 = vsyncpa [#allocation4], 1

</llo_original>
